<compile_context>
chip_gen: v6e
topology: v6e:2x2x1
jax: 0.10.0
libtpu: 0.0.40
codegen_flags: <defaults>
</compile_context>

<pallas_src>
import functools
import math

import jax
import jax.numpy as jnp
from jax.experimental import pallas as pl
from jax.experimental.pallas import tpu as pltpu

# ----------------------------- config (small, shape-consistent) --------------
B = 2            # batch
S = 8            # sequence length
VOCAB = 50       # synthetic vocab (roberta-base: 50265)
HID = 128        # hidden size (roberta-base: 768)
HEADS = 4        # attention heads (roberta-base: 12)
DHEAD = HID // HEADS
INTER = 256      # FFN intermediate (roberta-base: 3072)
LAYERS = 2       # encoder layers (roberta-base: 12)
NCLASS = 11      # classifier output dim (matches Linear(768, 11))
MAXPOS = 20      # position embedding table size
PAD_IDX = 1      # roberta padding_idx
LN_EPS = 1e-5


# ----------------------------- in-kernel helpers ------------------------------
def _ln(x, g, b):
    """Row-wise LayerNorm in f32."""
    mu = jnp.mean(x, axis=-1, keepdims=True)
    var = jnp.mean((x - mu) ** 2, axis=-1, keepdims=True)
    return (x - mu) * jax.lax.rsqrt(var + LN_EPS) * g + b


def _gelu_tanh(x):
    return 0.5 * x * (1.0 + jnp.tanh(
        0.7978845608028654 * (x + 0.044715 * x * x * x)))


def _bf(x):
    return x.astype(jnp.bfloat16)


# ----------------------------- fused encoder-stack kernel ---------------------
def _encoder_stack_kernel(emb_ref, mask_ref, eg_ref, eb_ref,
                          wqkv_ref, bqkv_ref, wo_ref, bo_ref,
                          ln1g_ref, ln1b_ref,
                          wi_ref, bi_ref, wf_ref, bf_ref,
                          ln2g_ref, ln2b_ref,
                          x_ref):
    """One grid step = one (batch row, encoder layer). x is resident in the
    output block across the layer axis (same block index for every l)."""
    l = pl.program_id(1)

    @pl.when(l == 0)
    def _():
        # embedding LayerNorm fused into the first layer step
        x_ref[...] = _ln(emb_ref[...].astype(jnp.float32),
                         eg_ref[...], eb_ref[...]).astype(x_ref.dtype)

    x = x_ref[...].astype(jnp.float32)                     # (S, HID)

    # ---- fused QKV projection: (S,HID) @ (HID,3*HID) ----
    qkv = (jnp.dot(_bf(x), wqkv_ref[0],
                   preferred_element_type=jnp.float32) + bqkv_ref[0])

    # ---- multi-head self-attention (all heads, one batch row) ----
    scale = 1.0 / math.sqrt(DHEAD)
    mask_bias = mask_ref[0]                                 # (1, S) additive bias
    ctx_heads = []
    for h in range(HEADS):
        qh = _bf(qkv[:, h * DHEAD:(h + 1) * DHEAD])                     # (S, Dh)
        kh = _bf(qkv[:, HID + h * DHEAD:HID + (h + 1) * DHEAD])         # (S, Dh)
        vh = _bf(qkv[:, 2 * HID + h * DHEAD:2 * HID + (h + 1) * DHEAD]) # (S, Dh)
        s = jax.lax.dot_general(qh, kh, (((1,), (1,)), ((), ())),
                                preferred_element_type=jnp.float32)     # (S, S)
        s = s * scale + mask_bias
        m = jnp.max(s, axis=-1, keepdims=True)
        p = jnp.exp(s - m)
        p = p * pl.reciprocal(jnp.sum(p, axis=-1, keepdims=True), approx=True)
        ctx_heads.append(jnp.dot(_bf(p), vh,
                                 preferred_element_type=jnp.float32))   # (S, Dh)
    ctx = jnp.concatenate(ctx_heads, axis=-1)               # (S, HID)

    # ---- attention output projection + residual + LN ----
    attn_out = (jnp.dot(_bf(ctx), wo_ref[0],
                        preferred_element_type=jnp.float32) + bo_ref[0])
    x = _ln(attn_out + x, ln1g_ref[0], ln1b_ref[0])

    # ---- FFN (gelu) + residual + LN ----
    inter = (jnp.dot(_bf(x), wi_ref[0],
                     preferred_element_type=jnp.float32) + bi_ref[0])
    inter = _gelu_tanh(inter)
    ffn_out = (jnp.dot(_bf(inter), wf_ref[0],
                       preferred_element_type=jnp.float32) + bf_ref[0])
    x = _ln(ffn_out + x, ln2g_ref[0], ln2b_ref[0])

    x_ref[...] = x.astype(x_ref.dtype)


def encoder_stack(params, emb, mask_bias):
    """emb: (B*S, HID) f32, mask_bias: (B, 1, S) f32 -> (B*S, HID) f32."""
    per_batch = lambda shape: pl.BlockSpec(shape, lambda b, l: (b, 0))
    shared2 = lambda shape: pl.BlockSpec(shape, lambda b, l: (0, 0))
    per_layer = lambda shape: pl.BlockSpec(shape, lambda b, l: (l, 0, 0))

    return pl.pallas_call(
        _encoder_stack_kernel,
        out_shape=jax.ShapeDtypeStruct((B * S, HID), jnp.float32),
        grid=(B, LAYERS),
        in_specs=[
            per_batch((S, HID)),                                  # emb
            pl.BlockSpec((1, 1, S), lambda b, l: (b, 0, 0)),      # mask bias
            shared2((1, HID)),                                    # emb_ln_g
            shared2((1, HID)),                                    # emb_ln_b
            per_layer((1, HID, 3 * HID)),                         # wqkv
            per_layer((1, 1, 3 * HID)),                           # bqkv
            per_layer((1, HID, HID)),                             # wo
            per_layer((1, 1, HID)),                               # bo
            per_layer((1, 1, HID)),                               # ln1_g
            per_layer((1, 1, HID)),                               # ln1_b
            per_layer((1, HID, INTER)),                           # wi
            per_layer((1, 1, INTER)),                             # bi
            per_layer((1, INTER, HID)),                           # wf
            per_layer((1, 1, HID)),                               # bf
            per_layer((1, 1, HID)),                               # ln2_g
            per_layer((1, 1, HID)),                               # ln2_b
        ],
        out_specs=per_batch((S, HID)),
        compiler_params=pltpu.CompilerParams(
            dimension_semantics=("parallel", "arbitrary")),
    )(emb, mask_bias, params["emb_ln_g"], params["emb_ln_b"],
      params["wqkv"], params["bqkv"], params["wo"], params["bo"],
      params["ln1_g"], params["ln1_b"],
      params["wi"], params["bi"], params["wf"], params["bf"],
      params["ln2_g"], params["ln2_b"])


# ----------------------------- fused pooler + classifier kernel ---------------
def _head_kernel(x_ref, pw_ref, pb_ref, cw_ref, cb_ref, o_ref):
    x = x_ref[...].astype(jnp.float32)                       # (B*S, HID)
    # [CLS] token of each sequence (row b*S)
    cls_tok = jnp.concatenate(
        [x[b * S:b * S + 1, :] for b in range(B)], axis=0)   # (B, HID)
    pooled = jnp.tanh(jnp.dot(_bf(cls_tok), pw_ref[...],
                              preferred_element_type=jnp.float32) + pb_ref[...])
    # Dropout(0.3): identity at inference
    logits = (jnp.dot(_bf(pooled), cw_ref[...],
                      preferred_element_type=jnp.float32) + cb_ref[...])
    o_ref[...] = logits.astype(o_ref.dtype)


def cls_head(params, x):
    return pl.pallas_call(
        _head_kernel,
        out_shape=jax.ShapeDtypeStruct((B, NCLASS), jnp.float32),
        grid=(1,),
        in_specs=[
            pl.BlockSpec((B * S, HID), lambda i: (0, 0)),
            pl.BlockSpec((HID, HID), lambda i: (0, 0)),
            pl.BlockSpec((1, HID), lambda i: (0, 0)),
            pl.BlockSpec((HID, NCLASS), lambda i: (0, 0)),
            pl.BlockSpec((1, NCLASS), lambda i: (0, 0)),
        ],
        out_specs=pl.BlockSpec((B, NCLASS), lambda i: (0, 0)),
    )(x, params["pool_w"], params["pool_b"], params["cls_w"], params["cls_b"])


# ----------------------------- params -----------------------------------------
def init_params(key):
    def nrm(k, shape, dtype=jnp.float32):
        return (0.02 * jax.random.normal(k, shape, dtype=jnp.float32)).astype(dtype)

    keys = jax.random.split(key, 9)
    return {
        # embeddings / LN params / biases stay f32; matmul weights in bf16
        "word_emb": nrm(keys[0], (VOCAB, HID)),
        "pos_emb": nrm(keys[1], (MAXPOS, HID)),
        "type_emb": nrm(keys[2], (1, HID)),          # roberta type_vocab_size = 1
        "emb_ln_g": jnp.ones((1, HID), jnp.float32),
        "emb_ln_b": jnp.zeros((1, HID), jnp.float32),
        # per-layer weights stacked along a leading LAYERS axis (grid-indexed)
        "wqkv": nrm(keys[3], (LAYERS, HID, 3 * HID), jnp.bfloat16),
        "bqkv": jnp.zeros((LAYERS, 1, 3 * HID), jnp.float32),
        "wo": nrm(keys[4], (LAYERS, HID, HID), jnp.bfloat16),
        "bo": jnp.zeros((LAYERS, 1, HID), jnp.float32),
        "ln1_g": jnp.ones((LAYERS, 1, HID), jnp.float32),
        "ln1_b": jnp.zeros((LAYERS, 1, HID), jnp.float32),
        "wi": nrm(keys[5], (LAYERS, HID, INTER), jnp.bfloat16),
        "bi": jnp.zeros((LAYERS, 1, INTER), jnp.float32),
        "wf": nrm(keys[6], (LAYERS, INTER, HID), jnp.bfloat16),
        "bf": jnp.zeros((LAYERS, 1, HID), jnp.float32),
        "ln2_g": jnp.ones((LAYERS, 1, HID), jnp.float32),
        "ln2_b": jnp.zeros((LAYERS, 1, HID), jnp.float32),
        # pooler + classifier
        "pool_w": nrm(keys[7], (HID, HID), jnp.bfloat16),
        "pool_b": jnp.zeros((1, HID), jnp.float32),
        "cls_w": nrm(keys[8], (HID, NCLASS), jnp.bfloat16),
        "cls_b": jnp.zeros((1, NCLASS), jnp.float32),
    }


# ----------------------------- forward -----------------------------------------
def roberta_class_forward(params, ids, mask, token_type_ids):
    # TODO(synk): embedding-table gathers stay in XLA glue (jnp.take); everything
    # dense/normalized runs inside the two Pallas kernels below.
    mask_i = mask.astype(jnp.int32)
    pos_ids = (jnp.cumsum(mask_i, axis=1) * mask_i) + PAD_IDX
    emb = (jnp.take(params["word_emb"], ids, axis=0)
           + jnp.take(params["pos_emb"], pos_ids, axis=0)
           + jnp.take(params["type_emb"], token_type_ids, axis=0))
    emb = emb.reshape(B * S, HID)

    # additive attention-mask bias, (B, 1, S); broadcast over heads in-kernel
    mask_bias = ((1.0 - mask.astype(jnp.float32)) * -10000.0).reshape(B, 1, S)

    # --- whole transformer stack: one pallas_call, grid=(B, LAYERS) ---
    x = encoder_stack(params, emb, mask_bias)                 # (B*S, HID)

    # --- pooler (dense+tanh on CLS) + Dropout(identity) + Linear(HID, 11) ---
    logits = cls_head(params, x)                              # (B, 11)
    return logits


# ----------------------------- main ---------------------------------------------
if __name__ == "__main__":
    root = jax.random.PRNGKey(0)
    k_param, k_ids = jax.random.split(root)

    params = init_params(k_param)

    ids = jax.random.randint(k_ids, (B, S), 3, VOCAB, dtype=jnp.int32)
    mask = jnp.ones((B, S), dtype=jnp.int32).at[1, S - 3:].set(0)  # some padding
    token_type_ids = jnp.zeros((B, S), dtype=jnp.int32)

    logits = jax.jit(roberta_class_forward)(params, ids, mask, token_type_ids)
    logits = jax.block_until_ready(logits)

    assert logits.shape == (B, NCLASS)
    assert jnp.all(jnp.isfinite(logits))
    print("KERNEL_OK")
</pallas_src>

<mosaic_0001>
module attributes {stable_mosaic.version = 11 : i64} {
  func.func @_head_kernel(%arg0: i32, %arg1: memref<16x128xf32, #tpu.memory_space<vmem>>, %arg2: memref<128x128xbf16, #tpu.memory_space<vmem>>, %arg3: memref<1x128xf32, #tpu.memory_space<vmem>>, %arg4: memref<128x11xbf16, #tpu.memory_space<vmem>>, %arg5: memref<1x11xf32, #tpu.memory_space<vmem>>, %arg6: memref<2x11xf32, #tpu.memory_space<vmem>>) attributes {dimension_semantics = [#tpu.dimension_semantics<arbitrary>], iteration_bounds = array<i64: 1>, scalar_prefetch = 0 : i64, scratch_operands = 0 : i64, tpu.core_type = #tpu.core_type<tc>, window_params = [{pipeline_mode = #tpu.pipeline_mode<synchronous>, transform_indices = @transform_0, window_bounds = array<i64: 16, 128>}, {pipeline_mode = #tpu.pipeline_mode<synchronous>, transform_indices = @transform_1, window_bounds = array<i64: 128, 128>}, {pipeline_mode = #tpu.pipeline_mode<synchronous>, transform_indices = @transform_2, window_bounds = array<i64: 1, 128>}, {pipeline_mode = #tpu.pipeline_mode<synchronous>, transform_indices = @transform_3, window_bounds = array<i64: 128, 11>}, {pipeline_mode = #tpu.pipeline_mode<synchronous>, transform_indices = @transform_4, window_bounds = array<i64: 1, 11>}, {pipeline_mode = #tpu.pipeline_mode<synchronous>, transform_indices = @transform_5, window_bounds = array<i64: 2, 11>}]} {
    %c0 = arith.constant 0 : index
    %c0_0 = arith.constant 0 : index
    %0 = vector.load %arg1[%c0, %c0_0] : memref<16x128xf32, #tpu.memory_space<vmem>>, vector<16x128xf32>
    %1 = vector.extract_strided_slice %0 {offsets = [0, 0], sizes = [1, 128], strides = [1, 1]} : vector<16x128xf32> to vector<1x128xf32>
    %2 = vector.extract_strided_slice %0 {offsets = [8, 0], sizes = [1, 128], strides = [1, 1]} : vector<16x128xf32> to vector<1x128xf32>
    %3 = tpu.concatenate %1, %2 in 0 : vector<1x128xf32>, vector<1x128xf32> -> vector<2x128xf32>
    %4 = arith.truncf %3 : vector<2x128xf32> to vector<2x128xbf16>
    %c0_1 = arith.constant 0 : index
    %c0_2 = arith.constant 0 : index
    %5 = vector.load %arg2[%c0_1, %c0_2] : memref<128x128xbf16, #tpu.memory_space<vmem>>, vector<128x128xbf16>
    %cst = arith.constant dense<0.000000e+00> : vector<2x128xf32>
    %6 = tpu.matmul %4, %5, %cst {dimension_numbers = #tpu.dot_dimension_numbers<[1], [0], [0], [1], [0, 0, 1, 1], [], []>} : vector<2x128xbf16>, vector<128x128xbf16>, vector<2x128xf32> -> vector<2x128xf32>
    %c0_3 = arith.constant 0 : index
    %c0_4 = arith.constant 0 : index
    %7 = vector.load %arg3[%c0_3, %c0_4] : memref<1x128xf32, #tpu.memory_space<vmem>>, vector<1x128xf32>
    %8 = vector.broadcast %7 : vector<1x128xf32> to vector<2x128xf32>
    %9 = arith.addf %6, %8 : vector<2x128xf32>
    %10 = math.tanh %9 : vector<2x128xf32>
    %11 = arith.truncf %10 : vector<2x128xf32> to vector<2x128xbf16>
    %c0_5 = arith.constant 0 : index
    %c0_6 = arith.constant 0 : index
    %12 = vector.load %arg4[%c0_5, %c0_6] : memref<128x11xbf16, #tpu.memory_space<vmem>>, vector<128x11xbf16>
    %cst_7 = arith.constant dense<0.000000e+00> : vector<2x11xf32>
    %13 = tpu.matmul %11, %12, %cst_7 {dimension_numbers = #tpu.dot_dimension_numbers<[1], [0], [0], [1], [0, 0, 1, 1], [], []>} : vector<2x128xbf16>, vector<128x11xbf16>, vector<2x11xf32> -> vector<2x11xf32>
    %c0_8 = arith.constant 0 : index
    %c0_9 = arith.constant 0 : index
    %14 = vector.load %arg5[%c0_8, %c0_9] : memref<1x11xf32, #tpu.memory_space<vmem>>, vector<1x11xf32>
    %15 = vector.broadcast %14 : vector<1x11xf32> to vector<2x11xf32>
    %16 = arith.addf %13, %15 : vector<2x11xf32>
    %c0_10 = arith.constant 0 : index
    %c0_11 = arith.constant 0 : index
    %17 = vector.load %arg6[%c0_10, %c0_11] : memref<2x11xf32, #tpu.memory_space<vmem>>, vector<2x11xf32>
    tpu.vector_store %arg6[%c0_10, %c0_11], %16 {strides = array<i32>} : memref<2x11xf32, #tpu.memory_space<vmem>>, vector<2x11xf32>,
    return
  }
  func.func @transform_0(%arg0: i32) -> (i32, i32) {
    %c0_i32 = arith.constant 0 : i32
    %c0_i32_0 = arith.constant 0 : i32
    %c0_i32_1 = arith.constant 0 : i32
    return %c0_i32, %c0_i32_0 : i32, i32
  }
  func.func @transform_1(%arg0: i32) -> (i32, i32) {
    %c0_i32 = arith.constant 0 : i32
    %c0_i32_0 = arith.constant 0 : i32
    %c0_i32_1 = arith.constant 0 : i32
    return %c0_i32, %c0_i32_0 : i32, i32
  }
  func.func @transform_2(%arg0: i32) -> (i32, i32) {
    %c0_i32 = arith.constant 0 : i32
    %c0_i32_0 = arith.constant 0 : i32
    %c0_i32_1 = arith.constant 0 : i32
    return %c0_i32, %c0_i32_0 : i32, i32
  }
  func.func @transform_3(%arg0: i32) -> (i32, i32) {
    %c0_i32 = arith.constant 0 : i32
    %c0_i32_0 = arith.constant 0 : i32
    %c0_i32_1 = arith.constant 0 : i32
    return %c0_i32, %c0_i32_0 : i32, i32
  }
  func.func @transform_4(%arg0: i32) -> (i32, i32) {
    %c0_i32 = arith.constant 0 : i32
    %c0_i32_0 = arith.constant 0 : i32
    %c0_i32_1 = arith.constant 0 : i32
    return %c0_i32, %c0_i32_0 : i32, i32
  }
  func.func @transform_5(%arg0: i32) -> (i32, i32) {
    %c0_i32 = arith.constant 0 : i32
    %c0_i32_0 = arith.constant 0 : i32
    %c0_i32_1 = arith.constant 0 : i32
    return %c0_i32, %c0_i32_0 : i32, i32
  }
}

module attributes {stable_mosaic.version = 11 : i64} {
  func.func @_encoder_stack_kernel(%arg0: i32, %arg1: i32, %arg2: memref<8x128xf32, #tpu.memory_space<vmem>>, %arg3: memref<1x1x8xf32, #tpu.memory_space<vmem>>, %arg4: memref<1x128xf32, #tpu.memory_space<vmem>>, %arg5: memref<1x128xf32, #tpu.memory_space<vmem>>, %arg6: memref<1x128x384xbf16, #tpu.memory_space<vmem>>, %arg7: memref<1x1x384xf32, #tpu.memory_space<vmem>>, %arg8: memref<1x128x128xbf16, #tpu.memory_space<vmem>>, %arg9: memref<1x1x128xf32, #tpu.memory_space<vmem>>, %arg10: memref<1x1x128xf32, #tpu.memory_space<vmem>>, %arg11: memref<1x1x128xf32, #tpu.memory_space<vmem>>, %arg12: memref<1x128x256xbf16, #tpu.memory_space<vmem>>, %arg13: memref<1x1x256xf32, #tpu.memory_space<vmem>>, %arg14: memref<1x256x128xbf16, #tpu.memory_space<vmem>>, %arg15: memref<1x1x128xf32, #tpu.memory_space<vmem>>, %arg16: memref<1x1x128xf32, #tpu.memory_space<vmem>>, %arg17: memref<1x1x128xf32, #tpu.memory_space<vmem>>, %arg18: memref<8x128xf32, #tpu.memory_space<vmem>>) attributes {dimension_semantics = [#tpu.dimension_semantics<parallel>, #tpu.dimension_semantics<arbitrary>], iteration_bounds = array<i64: 2, 2>, scalar_prefetch = 0 : i64, scratch_operands = 0 : i64, tpu.core_type = #tpu.core_type<tc>, window_params = [{transform_indices = @transform_0, window_bounds = array<i64: 8, 128>}, {transform_indices = @transform_1, window_bounds = array<i64: 1, 1, 8>}, {pipeline_mode = #tpu.pipeline_mode<synchronous>, transform_indices = @transform_2, window_bounds = array<i64: 1, 128>}, {pipeline_mode = #tpu.pipeline_mode<synchronous>, transform_indices = @transform_3, window_bounds = array<i64: 1, 128>}, {transform_indices = @transform_4, window_bounds = array<i64: 1, 128, 384>}, {transform_indices = @transform_5, window_bounds = array<i64: 1, 1, 384>}, {transform_indices = @transform_6, window_bounds = array<i64: 1, 128, 128>}, {transform_indices = @transform_7, window_bounds = array<i64: 1, 1, 128>}, {transform_indices = @transform_8, window_bounds = array<i64: 1, 1, 128>}, {transform_indices = @transform_9, window_bounds = array<i64: 1, 1, 128>}, {transform_indices = @transform_10, window_bounds = array<i64: 1, 128, 256>}, {transform_indices = @transform_11, window_bounds = array<i64: 1, 1, 256>}, {transform_indices = @transform_12, window_bounds = array<i64: 1, 256, 128>}, {transform_indices = @transform_13, window_bounds = array<i64: 1, 1, 128>}, {transform_indices = @transform_14, window_bounds = array<i64: 1, 1, 128>}, {transform_indices = @transform_15, window_bounds = array<i64: 1, 1, 128>}, {transform_indices = @transform_16, window_bounds = array<i64: 8, 128>}]} {
    %c0_i32 = arith.constant 0 : i32
    %0 = arith.cmpi eq, %arg1, %c0_i32 : i32
    %1 = arith.extui %0 : i1 to i32
    %c0_i32_0 = arith.constant 0 : i32
    %2 = arith.cmpi ne, %1, %c0_i32_0 : i32
    scf.if %2 {
      %c0_80 = arith.constant 0 : index
      %c0_81 = arith.constant 0 : index
      %199 = vector.load %arg2[%c0_80, %c0_81] : memref<8x128xf32, #tpu.memory_space<vmem>>, vector<8x128xf32>
      %c0_82 = arith.constant 0 : index
      %c0_83 = arith.constant 0 : index
      %200 = vector.load %arg4[%c0_82, %c0_83] : memref<1x128xf32, #tpu.memory_space<vmem>>, vector<1x128xf32>
      %c0_84 = arith.constant 0 : index
      %c0_85 = arith.constant 0 : index
      %201 = vector.load %arg5[%c0_84, %c0_85] : memref<1x128xf32, #tpu.memory_space<vmem>>, vector<1x128xf32>
      %cst_86 = arith.constant dense<0.000000e+00> : vector<8xf32>
      %202 = vector.multi_reduction <add>, %199, %cst_86 [1] : vector<8x128xf32> to vector<8xf32>
      %203 = vector.shape_cast %202 : vector<8xf32> to vector<8x1xf32>
      %cst_87 = arith.constant 1.280000e+02 : f32
      %204 = vector.broadcast %cst_87 : f32 to vector<8x1xf32>
      %205 = arith.divf %203, %204 : vector<8x1xf32>
      %206 = vector.broadcast %205 : vector<8x1xf32> to vector<8x128xf32>
      %207 = arith.subf %199, %206 : vector<8x128xf32>
      %208 = arith.mulf %207, %207 : vector<8x128xf32>
      %cst_88 = arith.constant dense<0.000000e+00> : vector<8xf32>
      %209 = vector.multi_reduction <add>, %208, %cst_88 [1] : vector<8x128xf32> to vector<8xf32>
      %210 = vector.shape_cast %209 : vector<8xf32> to vector<8x1xf32>
      %cst_89 = arith.constant 1.280000e+02 : f32
      %211 = vector.broadcast %cst_89 : f32 to vector<8x1xf32>
      %212 = arith.divf %210, %211 : vector<8x1xf32>
      %213 = vector.broadcast %205 : vector<8x1xf32> to vector<8x128xf32>
      %214 = arith.subf %199, %213 : vector<8x128xf32>
      %cst_90 = arith.constant 9.99999974E-6 : f32
      %215 = vector.broadcast %cst_90 : f32 to vector<8x1xf32>
      %216 = arith.addf %212, %215 : vector<8x1xf32>
      %217 = math.rsqrt %216 : vector<8x1xf32>
      %218 = vector.broadcast %217 : vector<8x1xf32> to vector<8x128xf32>
      %219 = arith.mulf %214, %218 : vector<8x128xf32>
      %220 = vector.broadcast %200 : vector<1x128xf32> to vector<8x128xf32>
      %221 = arith.mulf %219, %220 : vector<8x128xf32>
      %222 = vector.broadcast %201 : vector<1x128xf32> to vector<8x128xf32>
      %223 = arith.addf %221, %222 : vector<8x128xf32>
      %c0_91 = arith.constant 0 : index
      %c0_92 = arith.constant 0 : index
      %224 = vector.load %arg18[%c0_91, %c0_92] : memref<8x128xf32, #tpu.memory_space<vmem>>, vector<8x128xf32>
      tpu.vector_store %arg18[%c0_91, %c0_92], %223 {strides = array<i32>} : memref<8x128xf32, #tpu.memory_space<vmem>>, vector<8x128xf32>,
    } else {
    }
    %c0 = arith.constant 0 : index
    %c0_1 = arith.constant 0 : index
    %3 = vector.load %arg18[%c0, %c0_1] : memref<8x128xf32, #tpu.memory_space<vmem>>, vector<8x128xf32>
    %4 = arith.truncf %3 : vector<8x128xf32> to vector<8x128xbf16>
    %c0_2 = arith.constant 0 : index
    %c0_3 = arith.constant 0 : index
    %c0_4 = arith.constant 0 : index
    %5 = vector.load %arg6[%c0_2, %c0_3, %c0_4] : memref<1x128x384xbf16, #tpu.memory_space<vmem>>, vector<1x128x384xbf16>
    %6 = vector.shape_cast %5 : vector<1x128x384xbf16> to vector<128x384xbf16>
    %cst = arith.constant dense<0.000000e+00> : vector<8x384xf32>
    %7 = tpu.matmul %4, %6, %cst {dimension_numbers = #tpu.dot_dimension_numbers<[1], [0], [0], [1], [0, 0, 1, 1], [], []>} : vector<8x128xbf16>, vector<128x384xbf16>, vector<8x384xf32> -> vector<8x384xf32>
    %c0_5 = arith.constant 0 : index
    %c0_6 = arith.constant 0 : index
    %c0_7 = arith.constant 0 : index
    %8 = vector.load %arg7[%c0_5, %c0_6, %c0_7] : memref<1x1x384xf32, #tpu.memory_space<vmem>>, vector<1x1x384xf32>
    %9 = vector.shape_cast %8 : vector<1x1x384xf32> to vector<1x384xf32>
    %10 = vector.broadcast %9 : vector<1x384xf32> to vector<8x384xf32>
    %11 = arith.addf %7, %10 : vector<8x384xf32>
    %c0_8 = arith.constant 0 : index
    %c0_9 = arith.constant 0 : index
    %c0_10 = arith.constant 0 : index
    %12 = vector.load %arg3[%c0_8, %c0_9, %c0_10] : memref<1x1x8xf32, #tpu.memory_space<vmem>>, vector<1x1x8xf32>
    %13 = vector.shape_cast %12 : vector<1x1x8xf32> to vector<1x8xf32>
    %14 = vector.extract_strided_slice %11 {offsets = [0, 0], sizes = [8, 32], strides = [1, 1]} : vector<8x384xf32> to vector<8x32xf32>
    %15 = arith.truncf %14 : vector<8x32xf32> to vector<8x32xbf16>
    %16 = vector.extract_strided_slice %11 {offsets = [0, 128], sizes = [8, 32], strides = [1, 1]} : vector<8x384xf32> to vector<8x32xf32>
    %17 = arith.truncf %16 : vector<8x32xf32> to vector<8x32xbf16>
    %18 = vector.extract_strided_slice %11 {offsets = [0, 256], sizes = [8, 32], strides = [1, 1]} : vector<8x384xf32> to vector<8x32xf32>
    %19 = arith.truncf %18 : vector<8x32xf32> to vector<8x32xbf16>
    %cst_11 = arith.constant dense<0.000000e+00> : vector<8x8xf32>
    %20 = tpu.matmul %15, %17, %cst_11 {dimension_numbers = #tpu.dot_dimension_numbers<[1], [1], [0], [0], [0, 0, 1, 0], [], []>} : vector<8x32xbf16>, vector<8x32xbf16>, vector<8x8xf32> -> vector<8x8xf32>
    %cst_12 = arith.constant 0.176776692 : f32
    %21 = vector.broadcast %cst_12 : f32 to vector<8x8xf32>
    %22 = arith.mulf %20, %21 : vector<8x8xf32>
    %23 = vector.broadcast %13 : vector<1x8xf32> to vector<8x8xf32>
    %24 = arith.addf %22, %23 : vector<8x8xf32>
    %cst_13 = arith.constant dense<0xFF800000> : vector<8xf32>
    %25 = vector.multi_reduction <maximumf>, %24, %cst_13 [1] : vector<8x8xf32> to vector<8xf32>
    %26 = vector.shape_cast %25 : vector<8xf32> to vector<8x1xf32>
    %27 = vector.broadcast %26 : vector<8x1xf32> to vector<8x8xf32>
    %28 = arith.subf %24, %27 : vector<8x8xf32>
    %29 = math.exp %28 : vector<8x8xf32>
    %cst_14 = arith.constant dense<0.000000e+00> : vector<8xf32>
    %30 = vector.multi_reduction <add>, %29, %cst_14 [1] : vector<8x8xf32> to vector<8xf32>
    %31 = vector.shape_cast %30 : vector<8xf32> to vector<8x1xf32>
    %32 = tpu.reciprocal %31 {approx = true} : vector<8x1xf32> -> vector<8x1xf32>
    %33 = vector.broadcast %32 : vector<8x1xf32> to vector<8x8xf32>
    %34 = arith.mulf %29, %33 : vector<8x8xf32>
    %35 = arith.truncf %34 : vector<8x8xf32> to vector<8x8xbf16>
    %cst_15 = arith.constant dense<0.000000e+00> : vector<8x32xf32>
    %36 = tpu.matmul %35, %19, %cst_15 {dimension_numbers = #tpu.dot_dimension_numbers<[1], [0], [0], [1], [0, 0, 1, 1], [], []>} : vector<8x8xbf16>, vector<8x32xbf16>, vector<8x32xf32> -> vector<8x32xf32>
    %37 = vector.extract_strided_slice %11 {offsets = [0, 32], sizes = [8, 32], strides = [1, 1]} : vector<8x384xf32> to vector<8x32xf32>
    %38 = arith.truncf %37 : vector<8x32xf32> to vector<8x32xbf16>
    %39 = vector.extract_strided_slice %11 {offsets = [0, 160], sizes = [8, 32], strides = [1, 1]} : vector<8x384xf32> to vector<8x32xf32>
    %40 = arith.truncf %39 : vector<8x32xf32> to vector<8x32xbf16>
    %41 = vector.extract_strided_slice %11 {offsets = [0, 288], sizes = [8, 32], strides = [1, 1]} : vector<8x384xf32> to vector<8x32xf32>
    %42 = arith.truncf %41 : vector<8x32xf32> to vector<8x32xbf16>
    %cst_16 = arith.constant dense<0.000000e+00> : vector<8x8xf32>
    %43 = tpu.matmul %38, %40, %cst_16 {dimension_numbers = #tpu.dot_dimension_numbers<[1], [1], [0], [0], [0, 0, 1, 0], [], []>} : vector<8x32xbf16>, vector<8x32xbf16>, vector<8x8xf32> -> vector<8x8xf32>
    %cst_17 = arith.constant 0.176776692 : f32
    %44 = vector.broadcast %cst_17 : f32 to vector<8x8xf32>
    %45 = arith.mulf %43, %44 : vector<8x8xf32>
    %46 = vector.broadcast %13 : vector<1x8xf32> to vector<8x8xf32>
    %47 = arith.addf %45, %46 : vector<8x8xf32>
    %cst_18 = arith.constant dense<0xFF800000> : vector<8xf32>
    %48 = vector.multi_reduction <maximumf>, %47, %cst_18 [1] : vector<8x8xf32> to vector<8xf32>
    %49 = vector.shape_cast %48 : vector<8xf32> to vector<8x1xf32>
    %50 = vector.broadcast %49 : vector<8x1xf32> to vector<8x8xf32>
    %51 = arith.subf %47, %50 : vector<8x8xf32>
    %52 = math.exp %51 : vector<8x8xf32>
    %cst_19 = arith.constant dense<0.000000e+00> : vector<8xf32>
    %53 = vector.multi_reduction <add>, %52, %cst_19 [1] : vector<8x8xf32> to vector<8xf32>
    %54 = vector.shape_cast %53 : vector<8xf32> to vector<8x1xf32>
    %55 = tpu.reciprocal %54 {approx = true} : vector<8x1xf32> -> vector<8x1xf32>
    %56 = vector.broadcast %55 : vector<8x1xf32> to vector<8x8xf32>
    %57 = arith.mulf %52, %56 : vector<8x8xf32>
    %58 = arith.truncf %57 : vector<8x8xf32> to vector<8x8xbf16>
    %cst_20 = arith.constant dense<0.000000e+00> : vector<8x32xf32>
    %59 = tpu.matmul %58, %42, %cst_20 {dimension_numbers = #tpu.dot_dimension_numbers<[1], [0], [0], [1], [0, 0, 1, 1], [], []>} : vector<8x8xbf16>, vector<8x32xbf16>, vector<8x32xf32> -> vector<8x32xf32>
    %60 = vector.extract_strided_slice %11 {offsets = [0, 64], sizes = [8, 32], strides = [1, 1]} : vector<8x384xf32> to vector<8x32xf32>
    %61 = arith.truncf %60 : vector<8x32xf32> to vector<8x32xbf16>
    %62 = vector.extract_strided_slice %11 {offsets = [0, 192], sizes = [8, 32], strides = [1, 1]} : vector<8x384xf32> to vector<8x32xf32>
    %63 = arith.truncf %62 : vector<8x32xf32> to vector<8x32xbf16>
    %64 = vector.extract_strided_slice %11 {offsets = [0, 320], sizes = [8, 32], strides = [1, 1]} : vector<8x384xf32> to vector<8x32xf32>
    %65 = arith.truncf %64 : vector<8x32xf32> to vector<8x32xbf16>
    %cst_21 = arith.constant dense<0.000000e+00> : vector<8x8xf32>
    %66 = tpu.matmul %61, %63, %cst_21 {dimension_numbers = #tpu.dot_dimension_numbers<[1], [1], [0], [0], [0, 0, 1, 0], [], []>} : vector<8x32xbf16>, vector<8x32xbf16>, vector<8x8xf32> -> vector<8x8xf32>
    %cst_22 = arith.constant 0.176776692 : f32
    %67 = vector.broadcast %cst_22 : f32 to vector<8x8xf32>
    %68 = arith.mulf %66, %67 : vector<8x8xf32>
    %69 = vector.broadcast %13 : vector<1x8xf32> to vector<8x8xf32>
    %70 = arith.addf %68, %69 : vector<8x8xf32>
    %cst_23 = arith.constant dense<0xFF800000> : vector<8xf32>
    %71 = vector.multi_reduction <maximumf>, %70, %cst_23 [1] : vector<8x8xf32> to vector<8xf32>
    %72 = vector.shape_cast %71 : vector<8xf32> to vector<8x1xf32>
    %73 = vector.broadcast %72 : vector<8x1xf32> to vector<8x8xf32>
    %74 = arith.subf %70, %73 : vector<8x8xf32>
    %75 = math.exp %74 : vector<8x8xf32>
    %cst_24 = arith.constant dense<0.000000e+00> : vector<8xf32>
    %76 = vector.multi_reduction <add>, %75, %cst_24 [1] : vector<8x8xf32> to vector<8xf32>
    %77 = vector.shape_cast %76 : vector<8xf32> to vector<8x1xf32>
    %78 = tpu.reciprocal %77 {approx = true} : vector<8x1xf32> -> vector<8x1xf32>
    %79 = vector.broadcast %78 : vector<8x1xf32> to vector<8x8xf32>
    %80 = arith.mulf %75, %79 : vector<8x8xf32>
    %81 = arith.truncf %80 : vector<8x8xf32> to vector<8x8xbf16>
    %cst_25 = arith.constant dense<0.000000e+00> : vector<8x32xf32>
    %82 = tpu.matmul %81, %65, %cst_25 {dimension_numbers = #tpu.dot_dimension_numbers<[1], [0], [0], [1], [0, 0, 1, 1], [], []>} : vector<8x8xbf16>, vector<8x32xbf16>, vector<8x32xf32> -> vector<8x32xf32>
    %83 = vector.extract_strided_slice %11 {offsets = [0, 96], sizes = [8, 32], strides = [1, 1]} : vector<8x384xf32> to vector<8x32xf32>
    %84 = arith.truncf %83 : vector<8x32xf32> to vector<8x32xbf16>
    %85 = vector.extract_strided_slice %11 {offsets = [0, 224], sizes = [8, 32], strides = [1, 1]} : vector<8x384xf32> to vector<8x32xf32>
    %86 = arith.truncf %85 : vector<8x32xf32> to vector<8x32xbf16>
    %87 = vector.extract_strided_slice %11 {offsets = [0, 352], sizes = [8, 32], strides = [1, 1]} : vector<8x384xf32> to vector<8x32xf32>
    %88 = arith.truncf %87 : vector<8x32xf32> to vector<8x32xbf16>
    %cst_26 = arith.constant dense<0.000000e+00> : vector<8x8xf32>
    %89 = tpu.matmul %84, %86, %cst_26 {dimension_numbers = #tpu.dot_dimension_numbers<[1], [1], [0], [0], [0, 0, 1, 0], [], []>} : vector<8x32xbf16>, vector<8x32xbf16>, vector<8x8xf32> -> vector<8x8xf32>
    %cst_27 = arith.constant 0.176776692 : f32
    %90 = vector.broadcast %cst_27 : f32 to vector<8x8xf32>
    %91 = arith.mulf %89, %90 : vector<8x8xf32>
    %92 = vector.broadcast %13 : vector<1x8xf32> to vector<8x8xf32>
    %93 = arith.addf %91, %92 : vector<8x8xf32>
    %cst_28 = arith.constant dense<0xFF800000> : vector<8xf32>
    %94 = vector.multi_reduction <maximumf>, %93, %cst_28 [1] : vector<8x8xf32> to vector<8xf32>
    %95 = vector.shape_cast %94 : vector<8xf32> to vector<8x1xf32>
    %96 = vector.broadcast %95 : vector<8x1xf32> to vector<8x8xf32>
    %97 = arith.subf %93, %96 : vector<8x8xf32>
    %98 = math.exp %97 : vector<8x8xf32>
    %cst_29 = arith.constant dense<0.000000e+00> : vector<8xf32>
    %99 = vector.multi_reduction <add>, %98, %cst_29 [1] : vector<8x8xf32> to vector<8xf32>
    %100 = vector.shape_cast %99 : vector<8xf32> to vector<8x1xf32>
    %101 = tpu.reciprocal %100 {approx = true} : vector<8x1xf32> -> vector<8x1xf32>
    %102 = vector.broadcast %101 : vector<8x1xf32> to vector<8x8xf32>
    %103 = arith.mulf %98, %102 : vector<8x8xf32>
    %104 = arith.truncf %103 : vector<8x8xf32> to vector<8x8xbf16>
    %cst_30 = arith.constant dense<0.000000e+00> : vector<8x32xf32>
    %105 = tpu.matmul %104, %88, %cst_30 {dimension_numbers = #tpu.dot_dimension_numbers<[1], [0], [0], [1], [0, 0, 1, 1], [], []>} : vector<8x8xbf16>, vector<8x32xbf16>, vector<8x32xf32> -> vector<8x32xf32>
    %106 = tpu.concatenate %36, %59, %82, %105 in 1 : vector<8x32xf32>, vector<8x32xf32>, vector<8x32xf32>, vector<8x32xf32> -> vector<8x128xf32>
    %107 = arith.truncf %106 : vector<8x128xf32> to vector<8x128xbf16>
    %c0_31 = arith.constant 0 : index
    %c0_32 = arith.constant 0 : index
    %c0_33 = arith.constant 0 : index
    %108 = vector.load %arg8[%c0_31, %c0_32, %c0_33] : memref<1x128x128xbf16, #tpu.memory_space<vmem>>, vector<1x128x128xbf16>
    %109 = vector.shape_cast %108 : vector<1x128x128xbf16> to vector<128x128xbf16>
    %cst_34 = arith.constant dense<0.000000e+00> : vector<8x128xf32>
    %110 = tpu.matmul %107, %109, %cst_34 {dimension_numbers = #tpu.dot_dimension_numbers<[1], [0], [0], [1], [0, 0, 1, 1], [], []>} : vector<8x128xbf16>, vector<128x128xbf16>, vector<8x128xf32> -> vector<8x128xf32>
    %c0_35 = arith.constant 0 : index
    %c0_36 = arith.constant 0 : index
    %c0_37 = arith.constant 0 : index
    %111 = vector.load %arg9[%c0_35, %c0_36, %c0_37] : memref<1x1x128xf32, #tpu.memory_space<vmem>>, vector<1x1x128xf32>
    %112 = vector.shape_cast %111 : vector<1x1x128xf32> to vector<1x128xf32>
    %113 = vector.broadcast %112 : vector<1x128xf32> to vector<8x128xf32>
    %114 = arith.addf %110, %113 : vector<8x128xf32>
    %115 = arith.addf %114, %3 : vector<8x128xf32>
    %c0_38 = arith.constant 0 : index
    %c0_39 = arith.constant 0 : index
    %c0_40 = arith.constant 0 : index
    %116 = vector.load %arg10[%c0_38, %c0_39, %c0_40] : memref<1x1x128xf32, #tpu.memory_space<vmem>>, vector<1x1x128xf32>
    %117 = vector.shape_cast %116 : vector<1x1x128xf32> to vector<1x128xf32>
    %c0_41 = arith.constant 0 : index
    %c0_42 = arith.constant 0 : index
    %c0_43 = arith.constant 0 : index
    %118 = vector.load %arg11[%c0_41, %c0_42, %c0_43] : memref<1x1x128xf32, #tpu.memory_space<vmem>>, vector<1x1x128xf32>
    %119 = vector.shape_cast %118 : vector<1x1x128xf32> to vector<1x128xf32>
    %cst_44 = arith.constant dense<0.000000e+00> : vector<8xf32>
    %120 = vector.multi_reduction <add>, %115, %cst_44 [1] : vector<8x128xf32> to vector<8xf32>
    %121 = vector.shape_cast %120 : vector<8xf32> to vector<8x1xf32>
    %cst_45 = arith.constant 1.280000e+02 : f32
    %122 = vector.broadcast %cst_45 : f32 to vector<8x1xf32>
    %123 = arith.divf %121, %122 : vector<8x1xf32>
    %124 = vector.broadcast %123 : vector<8x1xf32> to vector<8x128xf32>
    %125 = arith.subf %115, %124 : vector<8x128xf32>
    %126 = arith.mulf %125, %125 : vector<8x128xf32>
    %cst_46 = arith.constant dense<0.000000e+00> : vector<8xf32>
    %127 = vector.multi_reduction <add>, %126, %cst_46 [1] : vector<8x128xf32> to vector<8xf32>
    %128 = vector.shape_cast %127 : vector<8xf32> to vector<8x1xf32>
    %cst_47 = arith.constant 1.280000e+02 : f32
    %129 = vector.broadcast %cst_47 : f32 to vector<8x1xf32>
    %130 = arith.divf %128, %129 : vector<8x1xf32>
    %131 = vector.broadcast %123 : vector<8x1xf32> to vector<8x128xf32>
    %132 = arith.subf %115, %131 : vector<8x128xf32>
    %cst_48 = arith.constant 9.99999974E-6 : f32
    %133 = vector.broadcast %cst_48 : f32 to vector<8x1xf32>
    %134 = arith.addf %130, %133 : vector<8x1xf32>
    %135 = math.rsqrt %134 : vector<8x1xf32>
    %136 = vector.broadcast %135 : vector<8x1xf32> to vector<8x128xf32>
    %137 = arith.mulf %132, %136 : vector<8x128xf32>
    %138 = vector.broadcast %117 : vector<1x128xf32> to vector<8x128xf32>
    %139 = arith.mulf %137, %138 : vector<8x128xf32>
    %140 = vector.broadcast %119 : vector<1x128xf32> to vector<8x128xf32>
    %141 = arith.addf %139, %140 : vector<8x128xf32>
    %142 = arith.truncf %141 : vector<8x128xf32> to vector<8x128xbf16>
    %c0_49 = arith.constant 0 : index
    %c0_50 = arith.constant 0 : index
    %c0_51 = arith.constant 0 : index
    %143 = vector.load %arg12[%c0_49, %c0_50, %c0_51] : memref<1x128x256xbf16, #tpu.memory_space<vmem>>, vector<1x128x256xbf16>
    %144 = vector.shape_cast %143 : vector<1x128x256xbf16> to vector<128x256xbf16>
    %cst_52 = arith.constant dense<0.000000e+00> : vector<8x256xf32>
    %145 = tpu.matmul %142, %144, %cst_52 {dimension_numbers = #tpu.dot_dimension_numbers<[1], [0], [0], [1], [0, 0, 1, 1], [], []>} : vector<8x128xbf16>, vector<128x256xbf16>, vector<8x256xf32> -> vector<8x256xf32>
    %c0_53 = arith.constant 0 : index
    %c0_54 = arith.constant 0 : index
    %c0_55 = arith.constant 0 : index
    %146 = vector.load %arg13[%c0_53, %c0_54, %c0_55] : memref<1x1x256xf32, #tpu.memory_space<vmem>>, vector<1x1x256xf32>
    %147 = vector.shape_cast %146 : vector<1x1x256xf32> to vector<1x256xf32>
    %148 = vector.broadcast %147 : vector<1x256xf32> to vector<8x256xf32>
    %149 = arith.addf %145, %148 : vector<8x256xf32>
    %cst_56 = arith.constant 5.000000e-01 : f32
    %150 = vector.broadcast %cst_56 : f32 to vector<8x256xf32>
    %151 = arith.mulf %150, %149 : vector<8x256xf32>
    %cst_57 = arith.constant 4.471500e-02 : f32
    %152 = vector.broadcast %cst_57 : f32 to vector<8x256xf32>
    %153 = arith.mulf %152, %149 : vector<8x256xf32>
    %154 = arith.mulf %153, %149 : vector<8x256xf32>
    %155 = arith.mulf %154, %149 : vector<8x256xf32>
    %156 = arith.addf %149, %155 : vector<8x256xf32>
    %cst_58 = arith.constant 0.797884583 : f32
    %157 = vector.broadcast %cst_58 : f32 to vector<8x256xf32>
    %158 = arith.mulf %157, %156 : vector<8x256xf32>
    %159 = math.tanh %158 : vector<8x256xf32>
    %cst_59 = arith.constant 1.000000e+00 : f32
    %160 = vector.broadcast %cst_59 : f32 to vector<8x256xf32>
    %161 = arith.addf %160, %159 : vector<8x256xf32>
    %162 = arith.mulf %151, %161 : vector<8x256xf32>
    %163 = arith.truncf %162 : vector<8x256xf32> to vector<8x256xbf16>
    %c0_60 = arith.constant 0 : index
    %c0_61 = arith.constant 0 : index
    %c0_62 = arith.constant 0 : index
    %164 = vector.load %arg14[%c0_60, %c0_61, %c0_62] : memref<1x256x128xbf16, #tpu.memory_space<vmem>>, vector<1x256x128xbf16>
    %165 = vector.shape_cast %164 : vector<1x256x128xbf16> to vector<256x128xbf16>
    %cst_63 = arith.constant dense<0.000000e+00> : vector<8x128xf32>
    %166 = tpu.matmul %163, %165, %cst_63 {dimension_numbers = #tpu.dot_dimension_numbers<[1], [0], [0], [1], [0, 0, 1, 1], [], []>} : vector<8x256xbf16>, vector<256x128xbf16>, vector<8x128xf32> -> vector<8x128xf32>
    %c0_64 = arith.constant 0 : index
    %c0_65 = arith.constant 0 : index
    %c0_66 = arith.constant 0 : index
    %167 = vector.load %arg15[%c0_64, %c0_65, %c0_66] : memref<1x1x128xf32, #tpu.memory_space<vmem>>, vector<1x1x128xf32>
    %168 = vector.shape_cast %167 : vector<1x1x128xf32> to vector<1x128xf32>
    %169 = vector.broadcast %168 : vector<1x128xf32> to vector<8x128xf32>
    %170 = arith.addf %166, %169 : vector<8x128xf32>
    %171 = arith.addf %170, %141 : vector<8x128xf32>
    %c0_67 = arith.constant 0 : index
    %c0_68 = arith.constant 0 : index
    %c0_69 = arith.constant 0 : index
    %172 = vector.load %arg16[%c0_67, %c0_68, %c0_69] : memref<1x1x128xf32, #tpu.memory_space<vmem>>, vector<1x1x128xf32>
    %173 = vector.shape_cast %172 : vector<1x1x128xf32> to vector<1x128xf32>
    %c0_70 = arith.constant 0 : index
    %c0_71 = arith.constant 0 : index
    %c0_72 = arith.constant 0 : index
    %174 = vector.load %arg17[%c0_70, %c0_71, %c0_72] : memref<1x1x128xf32, #tpu.memory_space<vmem>>, vector<1x1x128xf32>
    %175 = vector.shape_cast %174 : vector<1x1x128xf32> to vector<1x128xf32>
    %cst_73 = arith.constant dense<0.000000e+00> : vector<8xf32>
    %176 = vector.multi_reduction <add>, %171, %cst_73 [1] : vector<8x128xf32> to vector<8xf32>
    %177 = vector.shape_cast %176 : vector<8xf32> to vector<8x1xf32>
    %cst_74 = arith.constant 1.280000e+02 : f32
    %178 = vector.broadcast %cst_74 : f32 to vector<8x1xf32>
    %179 = arith.divf %177, %178 : vector<8x1xf32>
    %180 = vector.broadcast %179 : vector<8x1xf32> to vector<8x128xf32>
    %181 = arith.subf %171, %180 : vector<8x128xf32>
    %182 = arith.mulf %181, %181 : vector<8x128xf32>
    %cst_75 = arith.constant dense<0.000000e+00> : vector<8xf32>
    %183 = vector.multi_reduction <add>, %182, %cst_75 [1] : vector<8x128xf32> to vector<8xf32>
    %184 = vector.shape_cast %183 : vector<8xf32> to vector<8x1xf32>
    %cst_76 = arith.constant 1.280000e+02 : f32
    %185 = vector.broadcast %cst_76 : f32 to vector<8x1xf32>
    %186 = arith.divf %184, %185 : vector<8x1xf32>
    %187 = vector.broadcast %179 : vector<8x1xf32> to vector<8x128xf32>
    %188 = arith.subf %171, %187 : vector<8x128xf32>
    %cst_77 = arith.constant 9.99999974E-6 : f32
    %189 = vector.broadcast %cst_77 : f32 to vector<8x1xf32>
    %190 = arith.addf %186, %189 : vector<8x1xf32>
    %191 = math.rsqrt %190 : vector<8x1xf32>
    %192 = vector.broadcast %191 : vector<8x1xf32> to vector<8x128xf32>
    %193 = arith.mulf %188, %192 : vector<8x128xf32>
    %194 = vector.broadcast %173 : vector<1x128xf32> to vector<8x128xf32>
    %195 = arith.mulf %193, %194 : vector<8x128xf32>
    %196 = vector.broadcast %175 : vector<1x128xf32> to vector<8x128xf32>
    %197 = arith.addf %195, %196 : vector<8x128xf32>
    %c0_78 = arith.constant 0 : index
    %c0_79 = arith.constant 0 : index
    %198 = vector.load %arg18[%c0_78, %c0_79] : memref<8x128xf32, #tpu.memory_space<vmem>>, vector<8x128xf32>
    tpu.vector_store %arg18[%c0_78, %c0_79], %197 {strides = array<i32>} : memref<8x128xf32, #tpu.memory_space<vmem>>, vector<8x128xf32>,
    return
  }
  func.func @transform_0(%arg0: i32, %arg1: i32) -> (i32, i32) {
    %c0_i32 = arith.constant 0 : i32
    %c0_i32_0 = arith.constant 0 : i32
    return %arg0, %c0_i32 : i32, i32
  }
  func.func @transform_1(%arg0: i32, %arg1: i32) -> (i32, i32, i32) {
    %c0_i32 = arith.constant 0 : i32
    %c0_i32_0 = arith.constant 0 : i32
    %c0_i32_1 = arith.constant 0 : i32
    return %arg0, %c0_i32, %c0_i32_0 : i32, i32, i32
  }
  func.func @transform_2(%arg0: i32, %arg1: i32) -> (i32, i32) {
    %c0_i32 = arith.constant 0 : i32
    %c0_i32_0 = arith.constant 0 : i32
    %c0_i32_1 = arith.constant 0 : i32
    return %c0_i32, %c0_i32_0 : i32, i32
  }
  func.func @transform_3(%arg0: i32, %arg1: i32) -> (i32, i32) {
    %c0_i32 = arith.constant 0 : i32
    %c0_i32_0 = arith.constant 0 : i32
    %c0_i32_1 = arith.constant 0 : i32
    return %c0_i32, %c0_i32_0 : i32, i32
  }
  func.func @transform_4(%arg0: i32, %arg1: i32) -> (i32, i32, i32) {
    %c0_i32 = arith.constant 0 : i32
    %c0_i32_0 = arith.constant 0 : i32
    %c0_i32_1 = arith.constant 0 : i32
    return %arg1, %c0_i32, %c0_i32_0 : i32, i32, i32
  }
  func.func @transform_5(%arg0: i32, %arg1: i32) -> (i32, i32, i32) {
    %c0_i32 = arith.constant 0 : i32
    %c0_i32_0 = arith.constant 0 : i32
    %c0_i32_1 = arith.constant 0 : i32
    return %arg1, %c0_i32, %c0_i32_0 : i32, i32, i32
  }
  func.func @transform_6(%arg0: i32, %arg1: i32) -> (i32, i32, i32) {
    %c0_i32 = arith.constant 0 : i32
    %c0_i32_0 = arith.constant 0 : i32
    %c0_i32_1 = arith.constant 0 : i32
    return %arg1, %c0_i32, %c0_i32_0 : i32, i32, i32
  }
  func.func @transform_7(%arg0: i32, %arg1: i32) -> (i32, i32, i32) {
    %c0_i32 = arith.constant 0 : i32
    %c0_i32_0 = arith.constant 0 : i32
    %c0_i32_1 = arith.constant 0 : i32
    return %arg1, %c0_i32, %c0_i32_0 : i32, i32, i32
  }
  func.func @transform_8(%arg0: i32, %arg1: i32) -> (i32, i32, i32) {
    %c0_i32 = arith.constant 0 : i32
    %c0_i32_0 = arith.constant 0 : i32
    %c0_i32_1 = arith.constant 0 : i32
    return %arg1, %c0_i32, %c0_i32_0 : i32, i32, i32
  }
  func.func @transform_9(%arg0: i32, %arg1: i32) -> (i32, i32, i32) {
    %c0_i32 = arith.constant 0 : i32
    %c0_i32_0 = arith.constant 0 : i32
    %c0_i32_1 = arith.constant 0 : i32
    return %arg1, %c0_i32, %c0_i32_0 : i32, i32, i32
  }
  func.func @transform_10(%arg0: i32, %arg1: i32) -> (i32, i32, i32) {
    %c0_i32 = arith.constant 0 : i32
    %c0_i32_0 = arith.constant 0 : i32
    %c0_i32_1 = arith.constant 0 : i32
    return %arg1, %c0_i32, %c0_i32_0 : i32, i32, i32
  }
  func.func @transform_11(%arg0: i32, %arg1: i32) -> (i32, i32, i32) {
    %c0_i32 = arith.constant 0 : i32
    %c0_i32_0 = arith.constant 0 : i32
    %c0_i32_1 = arith.constant 0 : i32
    return %arg1, %c0_i32, %c0_i32_0 : i32, i32, i32
  }
  func.func @transform_12(%arg0: i32, %arg1: i32) -> (i32, i32, i32) {
    %c0_i32 = arith.constant 0 : i32
    %c0_i32_0 = arith.constant 0 : i32
    %c0_i32_1 = arith.constant 0 : i32
    return %arg1, %c0_i32, %c0_i32_0 : i32, i32, i32
  }
  func.func @transform_13(%arg0: i32, %arg1: i32) -> (i32, i32, i32) {
    %c0_i32 = arith.constant 0 : i32
    %c0_i32_0 = arith.constant 0 : i32
    %c0_i32_1 = arith.constant 0 : i32
    return %arg1, %c0_i32, %c0_i32_0 : i32, i32, i32
  }
  func.func @transform_14(%arg0: i32, %arg1: i32) -> (i32, i32, i32) {
    %c0_i32 = arith.constant 0 : i32
    %c0_i32_0 = arith.constant 0 : i32
    %c0_i32_1 = arith.constant 0 : i32
    return %arg1, %c0_i32, %c0_i32_0 : i32, i32, i32
  }
  func.func @transform_15(%arg0: i32, %arg1: i32) -> (i32, i32, i32) {
    %c0_i32 = arith.constant 0 : i32
    %c0_i32_0 = arith.constant 0 : i32
    %c0_i32_1 = arith.constant 0 : i32
    return %arg1, %c0_i32, %c0_i32_0 : i32, i32, i32
  }
  func.func @transform_16(%arg0: i32, %arg1: i32) -> (i32, i32) {
    %c0_i32 = arith.constant 0 : i32
    %c0_i32_0 = arith.constant 0 : i32
    return %arg0, %c0_i32 : i32, i32
  }
}

</mosaic_0001>

<llo_original>
// kernel: roberta_class_forward.3
$region0: #{roberta_class_forward.3}
  #allocation0 [shape = 'u32[]', space=smem, size = 0x4, offset = 0x4, fixed_abs, tag = 'smem constant byte address 0x4 - core index']
  #allocation1 [shape = 'u32[144,128]{1,0:T(1,128)}', space=vmem, size = 0x12000, scoped, tag = 'internal scratch']
  %s0 = inlined_call_operand.vmem [shape: f32[16,128], index: 0, kind: input, shape index: {}]
  %s1 = inlined_call_operand.vmem [shape: bf16[128,128], index: 1, kind: input, shape index: {}]
  %s2 = inlined_call_operand.vmem [shape: f32[1,128], index: 2, kind: input, shape index: {}]
  %s3 = inlined_call_operand.vmem [shape: bf16[128,11], index: 3, kind: input, shape index: {}]
  %s4 = inlined_call_operand.vmem [shape: f32[1,11], index: 4, kind: input, shape index: {}]
  %s5 = inlined_call_operand.hbm [shape: f32[2,11], index: 5, kind: output, shape index: {}]
  %s6 = sld [smem:[#allocation0]]
  $region30: #{roberta_class_forward.3} parent=0
    _
  %s8 = ssub.s32 1, %s6
  %s9 = scalar_select 0, %s8, %s6
  $region1: #{roberta_class_forward.3} parent=0
    #allocation2 [shape = 'u8[1024]{0}', space=vmem, size = 0x400, scoped, tag = 'output window, operand 0, single buffered']
    #allocation3 [shape = 's32[1]{0}', space=sflag, size = 0x4, scoped, tag = 'scoped memory for roberta_class_forward.3']
    %10 = vsyncpa [#allocation3], 0
    // Predicated region
    $region2: #{roberta_class_forward.3} parent=1 // pred_check
      _
    $region3: #{roberta_class_forward.3} parent=1 // pred_check_branch
      %12 = sbr.rel (0) target = $region5
    $region4: #{roberta_class_forward.3} parent=1 // pred_region
      _
    $region5: #{roberta_class_forward.3} parent=1 // pred_fallthru
      _
    // Predicated region
    $region6: #{roberta_class_forward.3} parent=1 // pred_check
      _
    $region7: #{roberta_class_forward.3} parent=1 // pred_check_branch
      %14 = sbr.rel (0) target = $region9
    $region8: #{roberta_class_forward.3} parent=1 // pred_region
      _
    $region9: #{roberta_class_forward.3} parent=1 // pred_fallthru
      _
    // Predicated region
    $region10: #{roberta_class_forward.3} parent=1 // pred_check
      _
    $region11: #{roberta_class_forward.3} parent=1 // pred_check_branch
      %16 = sbr.rel (0) target = $region13
    $region12: #{roberta_class_forward.3} parent=1 // pred_region
      _
    $region13: #{roberta_class_forward.3} parent=1 // pred_fallthru
      _
    // Predicated region
    $region14: #{roberta_class_forward.3} parent=1 // pred_check
      _
    $region15: #{roberta_class_forward.3} parent=1 // pred_check_branch
      %18 = sbr.rel (0) target = $region17
    $region16: #{roberta_class_forward.3} parent=1 // pred_region
      _
    $region17: #{roberta_class_forward.3} parent=1 // pred_fallthru
      _
    // Predicated region
    $region18: #{roberta_class_forward.3} parent=1 // pred_check
      _
    $region19: #{roberta_class_forward.3} parent=1 // pred_check_branch
      %20 = sbr.rel (0) target = $region21
    $region20: #{roberta_class_forward.3} parent=1 // pred_region
      _
    $region21: #{roberta_class_forward.3} parent=1 // pred_fallthru
      _
    %v22 = vld [vmem:[%s0] sm:$0xff]
    %v23 = vld [vmem:[%s0 + $0x8] sm:$0xff]
    %v25 = vrot.slane %v23, 7
    %vm27 = vcmask 1040384
    %v28 = vsel %vm27, %v22, %v25
    %v29 = vpack.c.bf16 %v28, %v28
    %v30 = vld [vmem:[%s1] sm:$0xf]
    %v31 = vld [vmem:[%s1 + $0x4] sm:$0xf]
    %v32 = vld [vmem:[%s1 + $0x8] sm:$0xf]
    %v33 = vld [vmem:[%s1 + $0xc] sm:$0xf]
    %v34 = vld [vmem:[%s1 + $0x10] sm:$0xf]
    %v35 = vld [vmem:[%s1 + $0x14] sm:$0xf]
    %v36 = vld [vmem:[%s1 + $0x18] sm:$0xf]
    %v37 = vld [vmem:[%s1 + $0x1c] sm:$0xf]
    %v38 = vld [vmem:[%s1 + $0x20] sm:$0xf]
    %v39 = vld [vmem:[%s1 + $0x24] sm:$0xf]
    %v40 = vld [vmem:[%s1 + $0x28] sm:$0xf]
    %v41 = vld [vmem:[%s1 + $0x2c] sm:$0xf]
    %v42 = vld [vmem:[%s1 + $0x30] sm:$0xf]
    %v43 = vld [vmem:[%s1 + $0x34] sm:$0xf]
    %v44 = vld [vmem:[%s1 + $0x38] sm:$0xf]
    %v45 = vld [vmem:[%s1 + $0x3c] sm:$0xf]
    %v46 = vld [vmem:[%s2] sm:$0x1]
    %v48 = vlaneseq
    %v49 = vshrl.u32 %v48, 7
    %v50 = vsub.s32 0, %v49
    %v51 = vrot.slane %v46, %v50
    %v69 = vunpack.c.l.b16 %v30
    %v70 = vunpack.c.l.b16 %v31
    %v71 = vunpack.c.l.b16 %v32
    %v72 = vunpack.c.l.b16 %v33
    %v73 = vunpack.c.l.b16 %v34
    %v74 = vunpack.c.l.b16 %v35
    %v75 = vunpack.c.l.b16 %v36
    %v76 = vunpack.c.l.b16 %v37
    %v77 = vunpack.c.l.b16 %v38
    %v78 = vunpack.c.l.b16 %v39
    %v79 = vunpack.c.l.b16 %v40
    %v80 = vunpack.c.l.b16 %v41
    %v81 = vunpack.c.l.b16 %v42
    %v82 = vunpack.c.l.b16 %v43
    %v83 = vunpack.c.l.b16 %v44
    %v84 = vunpack.c.l.b16 %v45
    %v85 = vpack.c.b16 %v70, %v69
    %v86 = vpack.c.b16 %v72, %v71
    %v87 = vpack.c.b16 %v74, %v73
    %v88 = vpack.c.b16 %v76, %v75
    %v89 = vpack.c.b16 %v78, %v77
    %v90 = vpack.c.b16 %v80, %v79
    %v91 = vpack.c.b16 %v82, %v81
    %v92 = vpack.c.b16 %v84, %v83
    %101 = vmatprep.subr.bf16.mxu0 0
    %102 = vmatpush1.bf16.msra.mxu0 %v92
    %103 = vmatprep.subr.bf16.mxu0 0
    %104 = vmatpush1.bf16.msra.mxu0 %v91
    %105 = vmatprep.subr.bf16.mxu0 0
    %106 = vmatpush1.bf16.msra.mxu0 %v90
    %107 = vmatprep.subr.bf16.mxu0 0
    %108 = vmatpush1.bf16.msra.mxu0 %v89
    %109 = vmatprep.subr.bf16.mxu0 0
    %110 = vmatpush1.bf16.msra.mxu0 %v88
    %111 = vmatprep.subr.bf16.mxu0 0
    %112 = vmatpush1.bf16.msra.mxu0 %v87
    %113 = vmatprep.subr.bf16.mxu0 0
    %114 = vmatpush1.bf16.msra.mxu0 %v86
    %115 = vmatprep.subr.bf16.mxu0 0
    %116 = vmatpush1.bf16.msra.mxu0 %v85
    %117 = vmatprep.subr.bf16.mxu0 0
    %118 = vmatpush2.bf16.msra.mxu0 0
    %119 = vmatprep.subr.bf16.mxu0 0
    %120 = vmatpush2.bf16.msra.mxu0 0
    %121 = vmatprep.subr.bf16.mxu0 0
    %122 = vmatpush2.bf16.msra.mxu0 0
    %123 = vmatprep.subr.bf16.mxu0 0
    %124 = vmatpush2.bf16.msra.mxu0 0
    %125 = vmatprep.subr.bf16.mxu0 0
    %126 = vmatpush2.bf16.msra.mxu0 0
    %127 = vmatprep.subr.bf16.mxu0 0
    %128 = vmatpush2.bf16.msra.mxu0 0
    %129 = vmatprep.subr.bf16.mxu0 0
    %130 = vmatpush2.bf16.msra.mxu0 0
    %131 = vmatprep.subr.bf16.mxu0 0
    %132 = vmatpush2.bf16.msra.mxu0 0
    %133 = vmatprep.mubr.bf16.mxu0 0
    %134 = vmatmul.mubr.bf16.gmra.mxu0 %v29
    %v135 = vpop.f32.mrf.mxu0
    %v136 = vadd.f32 %v51, %v135
    %v137 = vpop.f32.mrf.mxu0
    %v138 = vpop.f32.mrf.mxu0
    %v139 = vpop.f32.mrf.mxu0
    %140 = vdwg.mxu0
    %v141 = vtanh.pop %v136
    %v142 = vpack.c.bf16 %v141, %v141
    %v143 = vld [vmem:[%s3] sm:$0xf]
    %v144 = vld [vmem:[%s3 + $0x4] sm:$0xf]
    %v145 = vld [vmem:[%s3 + $0x8] sm:$0xf]
    %v146 = vld [vmem:[%s3 + $0xc] sm:$0xf]
    %v147 = vld [vmem:[%s3 + $0x10] sm:$0xf]
    %v148 = vld [vmem:[%s3 + $0x14] sm:$0xf]
    %v149 = vld [vmem:[%s3 + $0x18] sm:$0xf]
    %v150 = vld [vmem:[%s3 + $0x1c] sm:$0xf]
    %v151 = vld [vmem:[%s3 + $0x20] sm:$0xf]
    %v152 = vld [vmem:[%s3 + $0x24] sm:$0xf]
    %v153 = vld [vmem:[%s3 + $0x28] sm:$0xf]
    %v154 = vld [vmem:[%s3 + $0x2c] sm:$0xf]
    %v155 = vld [vmem:[%s3 + $0x30] sm:$0xf]
    %v156 = vld [vmem:[%s3 + $0x34] sm:$0xf]
    %v157 = vld [vmem:[%s3 + $0x38] sm:$0xf]
    %v158 = vld [vmem:[%s3 + $0x3c] sm:$0xf]
    %v159 = vld [vmem:[%s4] sm:$0x1]
    %v161 = vlaneseq
    %v162 = vshrl.u32 %v161, 7
    %v163 = vsub.s32 0, %v162
    %v164 = vrot.slane %v159, %v163
    %v182 = vunpack.c.l.b16 %v143
    %v183 = vunpack.c.l.b16 %v144
    %v184 = vunpack.c.l.b16 %v145
    %v185 = vunpack.c.l.b16 %v146
    %v186 = vunpack.c.l.b16 %v147
    %v187 = vunpack.c.l.b16 %v148
    %v188 = vunpack.c.l.b16 %v149
    %v189 = vunpack.c.l.b16 %v150
    %v190 = vunpack.c.l.b16 %v151
    %v191 = vunpack.c.l.b16 %v152
    %v192 = vunpack.c.l.b16 %v153
    %v193 = vunpack.c.l.b16 %v154
    %v194 = vunpack.c.l.b16 %v155
    %v195 = vunpack.c.l.b16 %v156
    %v196 = vunpack.c.l.b16 %v157
    %v197 = vunpack.c.l.b16 %v158
    %v198 = vpack.c.b16 %v183, %v182
    %v199 = vpack.c.b16 %v185, %v184
    %v200 = vpack.c.b16 %v187, %v186
    %v201 = vpack.c.b16 %v189, %v188
    %v202 = vpack.c.b16 %v191, %v190
    %v203 = vpack.c.b16 %v193, %v192
    %v204 = vpack.c.b16 %v195, %v194
    %v205 = vpack.c.b16 %v197, %v196
    %214 = vmatprep.subr.bf16.mxu0 0
    %215 = vmatpush1.bf16.msra.mxu0 %v205
    %216 = vmatprep.subr.bf16.mxu0 0
    %217 = vmatpush1.bf16.msra.mxu0 %v204
    %218 = vmatprep.subr.bf16.mxu0 0
    %219 = vmatpush1.bf16.msra.mxu0 %v203
    %220 = vmatprep.subr.bf16.mxu0 0
    %221 = vmatpush1.bf16.msra.mxu0 %v202
    %222 = vmatprep.subr.bf16.mxu0 0
    %223 = vmatpush1.bf16.msra.mxu0 %v201
    %224 = vmatprep.subr.bf16.mxu0 0
    %225 = vmatpush1.bf16.msra.mxu0 %v200
    %226 = vmatprep.subr.bf16.mxu0 0
    %227 = vmatpush1.bf16.msra.mxu0 %v199
    %228 = vmatprep.subr.bf16.mxu0 0
    %229 = vmatpush1.bf16.msra.mxu0 %v198
    %230 = vmatprep.subr.bf16.mxu0 0
    %231 = vmatpush2.bf16.msra.mxu0 0
    %232 = vmatprep.subr.bf16.mxu0 0
    %233 = vmatpush2.bf16.msra.mxu0 0
    %234 = vmatprep.subr.bf16.mxu0 0
    %235 = vmatpush2.bf16.msra.mxu0 0
    %236 = vmatprep.subr.bf16.mxu0 0
    %237 = vmatpush2.bf16.msra.mxu0 0
    %238 = vmatprep.subr.bf16.mxu0 0
    %239 = vmatpush2.bf16.msra.mxu0 0
    %240 = vmatprep.subr.bf16.mxu0 0
    %241 = vmatpush2.bf16.msra.mxu0 0
    %242 = vmatprep.subr.bf16.mxu0 0
    %243 = vmatpush2.bf16.msra.mxu0 0
    %244 = vmatprep.subr.bf16.mxu0 0
    %245 = vmatpush2.bf16.msra.mxu0 0
    %246 = vmatprep.mubr.bf16.mxu0 0
    %247 = vmatmul.mubr.bf16.gmra.mxu0 %v142
    %v248 = vpop.f32.mrf.mxu0
    %v249 = vadd.f32 %v164, %v248
    %v250 = vpop.f32.mrf.mxu0
    %v251 = vpop.f32.mrf.mxu0
    %v252 = vpop.f32.mrf.mxu0
    %253 = vdwg.mxu0
    %vm254 = vcmask 82944
    %255 = vst.msk [vmem:[#allocation2] sm:$0x3] %vm254, %v249
    // Predicated region
    $region22: #{roberta_class_forward.3} parent=1 // pred_check
      _
    $region23: #{roberta_class_forward.3} parent=1 // pred_check_branch
      %257 = sbr.rel (0) target = $region25
    $region24: #{roberta_class_forward.3} parent=1 // pred_region
      %s259 = ssub.s32 32, 32
      %260 = vsyncadd [#allocation3], %s259
      %s262 = sshll.u32 [#allocation2], 4
      %s263 = int_to_ptr.vmem [resolvable:$true] %s262
      %265 = dma.vmem_to_hbm [thread:$0]  %s263, 32, %s5, [#allocation3]
    $region25: #{roberta_class_forward.3} parent=1 // pred_fallthru
      _
    // Predicated region
    $region26: #{roberta_class_forward.3} parent=1 // pred_check
      _
    $region27: #{roberta_class_forward.3} parent=1 // pred_check_branch
      %267 = sbr.rel (0) target = $region29
    $region28: #{roberta_class_forward.3} parent=1 // pred_region
      %268 = dma.done [#allocation3], 32
    $region29: #{roberta_class_forward.3} parent=1 // pred_fallthru
      _
    %269 = vsyncpa [#allocation3], 1

// kernel: roberta_class_forward.2
$region0: #{roberta_class_forward.2}
  #allocation0 [shape = 'u32[]', space=smem, size = 0x4, offset = 0x4, fixed_abs, tag = 'smem constant byte address 0x4 - core index']
  #allocation1 [shape = 'u32[144,128]{1,0:T(1,128)}', space=vmem, size = 0x12000, scoped, tag = 'internal scratch']
  %s0 = inlined_call_operand.vmem [shape: f32[16,128], index: 0, kind: input, shape index: {}]
  %s1 = inlined_call_operand.vmem [shape: f32[2,1,8], index: 1, kind: input, shape index: {}]
  %s2 = inlined_call_operand.hbm [shape: f32[1,128], index: 2, kind: input, shape index: {}]
  %s3 = inlined_call_operand.hbm [shape: f32[1,128], index: 3, kind: input, shape index: {}]
  %s4 = inlined_call_operand.hbm [shape: bf16[2,128,384], index: 4, kind: input, shape index: {}]
  %s5 = inlined_call_operand.hbm [shape: f32[2,1,384], index: 5, kind: input, shape index: {}]
  %s6 = inlined_call_operand.vmem [shape: bf16[2,128,128], index: 6, kind: input, shape index: {}]
  %s7 = inlined_call_operand.hbm [shape: f32[2,1,128], index: 7, kind: input, shape index: {}]
  %s8 = inlined_call_operand.vmem [shape: f32[2,1,128], index: 8, kind: input, shape index: {}]
  %s9 = inlined_call_operand.vmem [shape: f32[2,1,128], index: 9, kind: input, shape index: {}]
  %s10 = inlined_call_operand.vmem [shape: bf16[2,128,256], index: 10, kind: input, shape index: {}]
  %s11 = inlined_call_operand.hbm [shape: f32[2,1,256], index: 11, kind: input, shape index: {}]
  %s12 = inlined_call_operand.hbm [shape: bf16[2,256,128], index: 12, kind: input, shape index: {}]
  %s13 = inlined_call_operand.hbm [shape: f32[2,1,128], index: 13, kind: input, shape index: {}]
  %s14 = inlined_call_operand.vmem [shape: f32[2,1,128], index: 14, kind: input, shape index: {}]
  %s15 = inlined_call_operand.vmem [shape: f32[2,1,128], index: 15, kind: input, shape index: {}]
  %s16 = inlined_call_operand.vmem [shape: f32[16,128], index: 16, kind: output, shape index: {}]
  %s17 = sld [smem:[#allocation0]]
  $region133: #{roberta_class_forward.2} parent=0
    _
  %s19 = ssub.s32 1, %s17
  %s20 = scalar_select 0, %s19, %s17
  $region1: #{roberta_class_forward.2} parent=0
    #allocation2 [shape = 'u8[512]{0}', space=vmem, size = 0x400, scoped, tag = 'input window, operand 2, single buffered']
    #allocation3 [shape = 's32[2]{0}', space=sflag, size = 0x8, scoped, tag = 'scoped memory for roberta_class_forward.2']
    #allocation4 [shape = 'u8[512]{0}', space=vmem, size = 0x400, scoped, tag = 'input window, operand 3, single buffered']
    #allocation5 [shape = 's32[1]{0}', space=sflag, size = 0x4, scoped, tag = 'scoped memory for roberta_class_forward.2']
    #allocation6 [shape = 'u8[196608]{0}', space=vmem, size = 0x30000, scoped, tag = 'input window, operand 4']
    #allocation7 [shape = 'u8[3072]{0}', space=vmem, size = 0xc00, scoped, tag = 'input window, operand 5']
    #allocation8 [shape = 'u8[1024]{0}', space=vmem, size = 0x400, scoped, tag = 'input window, operand 7']
    #allocation9 [shape = 'u8[2048]{0}', space=vmem, size = 0x800, scoped, tag = 'input window, operand 11']
    #allocation10 [shape = 'u8[131072]{0}', space=vmem, size = 0x20000, scoped, tag = 'input window, operand 12']
    #allocation11 [shape = 'u8[1024]{0}', space=vmem, size = 0x400, scoped, tag = 'input window, operand 13']
    %21 = vsyncpa [#allocation3], 0
    %22 = vsyncpa [#allocation5], 0
    loop: start=0, step=1, limit=6
    $region2: #{roberta_class_forward.2} parent=1 // loop_pre_header
      _
    $region3: #{roberta_class_forward.2} parent=1 // loop_header
      %s24 = sphi 0, %s28
      %p25 = scmp.ge.s32.totalorder %s24, 6
      %s31 = sphi 0, %s43
      %s32 = sphi 0, %s39
      %s33 = sphi 0, %s31
      %s34 = sphi 0, %s32
      %s35 = sphi 0, %s33
      %s36 = sphi 0, %s34
      %s46 = sphi 0, %s48
      %s49 = sphi 0, %s46
      %s50 = sphi 0, %s49
      %s66 = sphi 0, %s50
      %s72 = sphi 0, %s74
      %s75 = sphi 0, %s72
      %s76 = sphi 0, %s75
      %s92 = sphi 0, %s76
      %s96 = sphi 0, %s96
      %s98 = sphi 0, %s96
      %s99 = sphi 0, %s98
      %s113 = sphi 0, %s99
      %s117 = sphi 0, %s117
      %s119 = sphi 0, %s117
      %s120 = sphi 0, %s119
      %s134 = sphi 0, %s120
      %s140 = sphi 0, %s142
      %s143 = sphi 0, %s140
      %s144 = sphi 0, %s143
      %s160 = sphi 0, %s144
      %s166 = sphi 0, %s168
      %s169 = sphi 0, %s166
      %s170 = sphi 0, %s169
      %s186 = sphi 0, %s170
      %s192 = sphi 0, %s194
      %s195 = sphi 0, %s192
      %s196 = sphi 0, %s195
      %s212 = sphi 0, %s196
      %s218 = sphi 0, %s220
      %s221 = sphi 0, %s218
      %s222 = sphi 0, %s221
      %s238 = sphi 0, %s222
      %s244 = sphi 0, %s246
      %s247 = sphi 0, %s244
      %s248 = sphi 0, %s247
      %s264 = sphi 0, %s248
      %s270 = sphi 0, %s272
      %s273 = sphi 0, %s270
      %s274 = sphi 0, %s273
      %s290 = sphi 0, %s274
      %s296 = sphi 0, %s298
      %s299 = sphi 0, %s296
      %s300 = sphi 0, %s299
      %s316 = sphi 0, %s300
      %s322 = sphi 0, %s324
      %s325 = sphi 0, %s322
      %s326 = sphi 0, %s325
      %s342 = sphi 0, %s326
      %s348 = sphi 0, %s350
      %s351 = sphi 0, %s348
      %s352 = sphi 0, %s351
      %s368 = sphi 0, %s352
      %s374 = sphi 0, %s376
      %s377 = sphi 0, %s374
      %s378 = sphi 0, %s377
      %s394 = sphi 0, %s378
      %s400 = sphi 0, %s402
      %s403 = sphi 0, %s400
      %s404 = sphi 0, %s403
      %s420 = sphi 0, %s404
      %s426 = sphi 0, %s428
      %s429 = sphi 0, %s426
      %s430 = sphi 0, %s429
      %s446 = sphi 0, %s430
      %s452 = sphi 0, %s454
      %s455 = sphi 0, %s452
      %s456 = sphi 0, %s455
      %s472 = sphi 0, %s456
    $region4: #{roberta_class_forward.2} parent=1 // loop_header_branch
      %27 = sbr.rel (%p25) target = $region8
    $region5: #{roberta_class_forward.2} parent=1 // loop_body
      %s29 = ssub.s32 %s24, 1
      %s30 = ssub.s32 %s24, 2
      %s37 = sadd.s32 1, %s32
      %p38 = scmp.ge.s32.totalorder %s37, 2
      %s39 = scalar_select %p38, 0, %s37
      %s40 = sadd.s32 1, %s31
      %s41 = scalar_select %p38, %s40, %s31
      %p42 = scmp.ge.s32.totalorder %s41, 2
      %s43 = scalar_select %p42, 0, %s41
      %s44 = ssub.s32 %s31, %s43
      %p45 = scmp.eq.s32.totalorder %s44, 0
      %s47 = sadd.s32 %s46, 1
      %s48 = scalar_select %p45, %s46, %s47
      %p51 = pneg %p45
      %p52 = scmp.eq.s32.totalorder %s24, 3
      %p53 = por %p51, %p52
      %p54 = scmp.ne.s32.totalorder %s46, %s49
      %p55 = scmp.eq.s32.totalorder %s24, 0
      %p56 = por %p54, %p55
      %p57 = scmp.ne.s32.totalorder %s46, %s49
      %p58 = scmp.eq.s32.totalorder %s29, 3
      %p59 = por %p57, %p58
      %p60 = scmp.ne.s32.totalorder %s49, %s50
      %p61 = scmp.eq.s32.totalorder %s29, 0
      %p62 = por %p60, %p61
      %p63 = scmp.ne.s32.totalorder %s49, %s50
      %p64 = scmp.eq.s32.totalorder %s30, 3
      %p65 = por %p63, %p64
      %p67 = scmp.ne.s32.totalorder %s50, %s66
      %p68 = scmp.eq.s32.totalorder %s30, 0
      %p69 = por %p67, %p68
      %s70 = ssub.s32 %s31, %s43
      %p71 = scmp.eq.s32.totalorder %s70, 0
      %s73 = sadd.s32 %s72, 1
      %s74 = scalar_select %p71, %s72, %s73
      %p77 = pneg %p71
      %p78 = scmp.eq.s32.totalorder %s24, 3
      %p79 = por %p77, %p78
      %p80 = scmp.ne.s32.totalorder %s72, %s75
      %p81 = scmp.eq.s32.totalorder %s24, 0
      %p82 = por %p80, %p81
      %p83 = scmp.ne.s32.totalorder %s72, %s75
      %p84 = scmp.eq.s32.totalorder %s29, 3
      %p85 = por %p83, %p84
      %p86 = scmp.ne.s32.totalorder %s75, %s76
      %p87 = scmp.eq.s32.totalorder %s29, 0
      %p88 = por %p86, %p87
      %p89 = scmp.ne.s32.totalorder %s75, %s76
      %p90 = scmp.eq.s32.totalorder %s30, 3
      %p91 = por %p89, %p90
      %p93 = scmp.ne.s32.totalorder %s76, %s92
      %p94 = scmp.eq.s32.totalorder %s30, 0
      %p95 = por %p93, %p94
      %s97 = sadd.s32 %s96, 1
      %p100 = scmp.eq.s32.totalorder %s24, 3
      %p101 = scmp.ne.s32.totalorder %s96, %s98
      %p102 = scmp.eq.s32.totalorder %s24, 0
      %p103 = por %p101, %p102
      %p104 = scmp.ne.s32.totalorder %s96, %s98
      %p105 = scmp.eq.s32.totalorder %s29, 3
      %p106 = por %p104, %p105
      %p107 = scmp.ne.s32.totalorder %s98, %s99
      %p108 = scmp.eq.s32.totalorder %s29, 0
      %p109 = por %p107, %p108
      %p110 = scmp.ne.s32.totalorder %s98, %s99
      %p111 = scmp.eq.s32.totalorder %s30, 3
      %p112 = por %p110, %p111
      %p114 = scmp.ne.s32.totalorder %s99, %s113
      %p115 = scmp.eq.s32.totalorder %s30, 0
      %p116 = por %p114, %p115
      %s118 = sadd.s32 %s117, 1
      %p121 = scmp.eq.s32.totalorder %s24, 3
      %p122 = scmp.ne.s32.totalorder %s117, %s119
      %p123 = scmp.eq.s32.totalorder %s24, 0
      %p124 = por %p122, %p123
      %p125 = scmp.ne.s32.totalorder %s117, %s119
      %p126 = scmp.eq.s32.totalorder %s29, 3
      %p127 = por %p125, %p126
      %p128 = scmp.ne.s32.totalorder %s119, %s120
      %p129 = scmp.eq.s32.totalorder %s29, 0
      %p130 = por %p128, %p129
      %p131 = scmp.ne.s32.totalorder %s119, %s120
      %p132 = scmp.eq.s32.totalorder %s30, 3
      %p133 = por %p131, %p132
      %p135 = scmp.ne.s32.totalorder %s120, %s134
      %p136 = scmp.eq.s32.totalorder %s30, 0
      %p137 = por %p135, %p136
      %s138 = ssub.s32 %s32, %s39
      %p139 = scmp.eq.s32.totalorder %s138, 0
      %s141 = sadd.s32 %s140, 1
      %s142 = scalar_select %p139, %s140, %s141
      %p145 = pneg %p139
      %p146 = scmp.eq.s32.totalorder %s24, 3
      %p147 = por %p145, %p146
      %p148 = scmp.ne.s32.totalorder %s140, %s143
      %p149 = scmp.eq.s32.totalorder %s24, 0
      %p150 = por %p148, %p149
      %p151 = scmp.ne.s32.totalorder %s140, %s143
      %p152 = scmp.eq.s32.totalorder %s29, 3
      %p153 = por %p151, %p152
      %p154 = scmp.ne.s32.totalorder %s143, %s144
      %p155 = scmp.eq.s32.totalorder %s29, 0
      %p156 = por %p154, %p155
      %p157 = scmp.ne.s32.totalorder %s143, %s144
      %p158 = scmp.eq.s32.totalorder %s30, 3
      %p159 = por %p157, %p158
      %p161 = scmp.ne.s32.totalorder %s144, %s160
      %p162 = scmp.eq.s32.totalorder %s30, 0
      %p163 = por %p161, %p162
      %s164 = ssub.s32 %s32, %s39
      %p165 = scmp.eq.s32.totalorder %s164, 0
      %s167 = sadd.s32 %s166, 1
      %s168 = scalar_select %p165, %s166, %s167
      %p171 = pneg %p165
      %p172 = scmp.eq.s32.totalorder %s24, 3
      %p173 = por %p171, %p172
      %p174 = scmp.ne.s32.totalorder %s166, %s169
      %p175 = scmp.eq.s32.totalorder %s24, 0
      %p176 = por %p174, %p175
      %p177 = scmp.ne.s32.totalorder %s166, %s169
      %p178 = scmp.eq.s32.totalorder %s29, 3
      %p179 = por %p177, %p178
      %p180 = scmp.ne.s32.totalorder %s169, %s170
      %p181 = scmp.eq.s32.totalorder %s29, 0
      %p182 = por %p180, %p181
      %p183 = scmp.ne.s32.totalorder %s169, %s170
      %p184 = scmp.eq.s32.totalorder %s30, 3
      %p185 = por %p183, %p184
      %p187 = scmp.ne.s32.totalorder %s170, %s186
      %p188 = scmp.eq.s32.totalorder %s30, 0
      %p189 = por %p187, %p188
      %s190 = ssub.s32 %s32, %s39
      %p191 = scmp.eq.s32.totalorder %s190, 0
      %s193 = sadd.s32 %s192, 1
      %s194 = scalar_select %p191, %s192, %s193
      %p197 = pneg %p191
      %p198 = scmp.eq.s32.totalorder %s24, 3
      %p199 = por %p197, %p198
      %p200 = scmp.ne.s32.totalorder %s192, %s195
      %p201 = scmp.eq.s32.totalorder %s24, 0
      %p202 = por %p200, %p201
      %p203 = scmp.ne.s32.totalorder %s192, %s195
      %p204 = scmp.eq.s32.totalorder %s29, 3
      %p205 = por %p203, %p204
      %p206 = scmp.ne.s32.totalorder %s195, %s196
      %p207 = scmp.eq.s32.totalorder %s29, 0
      %p208 = por %p206, %p207
      %p209 = scmp.ne.s32.totalorder %s195, %s196
      %p210 = scmp.eq.s32.totalorder %s30, 3
      %p211 = por %p209, %p210
      %p213 = scmp.ne.s32.totalorder %s196, %s212
      %p214 = scmp.eq.s32.totalorder %s30, 0
      %p215 = por %p213, %p214
      %s216 = ssub.s32 %s32, %s39
      %p217 = scmp.eq.s32.totalorder %s216, 0
      %s219 = sadd.s32 %s218, 1
      %s220 = scalar_select %p217, %s218, %s219
      %p223 = pneg %p217
      %p224 = scmp.eq.s32.totalorder %s24, 3
      %p225 = por %p223, %p224
      %p226 = scmp.ne.s32.totalorder %s218, %s221
      %p227 = scmp.eq.s32.totalorder %s24, 0
      %p228 = por %p226, %p227
      %p229 = scmp.ne.s32.totalorder %s218, %s221
      %p230 = scmp.eq.s32.totalorder %s29, 3
      %p231 = por %p229, %p230
      %p232 = scmp.ne.s32.totalorder %s221, %s222
      %p233 = scmp.eq.s32.totalorder %s29, 0
      %p234 = por %p232, %p233
      %p235 = scmp.ne.s32.totalorder %s221, %s222
      %p236 = scmp.eq.s32.totalorder %s30, 3
      %p237 = por %p235, %p236
      %p239 = scmp.ne.s32.totalorder %s222, %s238
      %p240 = scmp.eq.s32.totalorder %s30, 0
      %p241 = por %p239, %p240
      %s242 = ssub.s32 %s32, %s39
      %p243 = scmp.eq.s32.totalorder %s242, 0
      %s245 = sadd.s32 %s244, 1
      %s246 = scalar_select %p243, %s244, %s245
      %p249 = pneg %p243
      %p250 = scmp.eq.s32.totalorder %s24, 3
      %p251 = por %p249, %p250
      %p252 = scmp.ne.s32.totalorder %s244, %s247
      %p253 = scmp.eq.s32.totalorder %s24, 0
      %p254 = por %p252, %p253
      %p255 = scmp.ne.s32.totalorder %s244, %s247
      %p256 = scmp.eq.s32.totalorder %s29, 3
      %p257 = por %p255, %p256
      %p258 = scmp.ne.s32.totalorder %s247, %s248
      %p259 = scmp.eq.s32.totalorder %s29, 0
      %p260 = por %p258, %p259
      %p261 = scmp.ne.s32.totalorder %s247, %s248
      %p262 = scmp.eq.s32.totalorder %s30, 3
      %p263 = por %p261, %p262
      %p265 = scmp.ne.s32.totalorder %s248, %s264
      %p266 = scmp.eq.s32.totalorder %s30, 0
      %p267 = por %p265, %p266
      %s268 = ssub.s32 %s32, %s39
      %p269 = scmp.eq.s32.totalorder %s268, 0
      %s271 = sadd.s32 %s270, 1
      %s272 = scalar_select %p269, %s270, %s271
      %p275 = pneg %p269
      %p276 = scmp.eq.s32.totalorder %s24, 3
      %p277 = por %p275, %p276
      %p278 = scmp.ne.s32.totalorder %s270, %s273
      %p279 = scmp.eq.s32.totalorder %s24, 0
      %p280 = por %p278, %p279
      %p281 = scmp.ne.s32.totalorder %s270, %s273
      %p282 = scmp.eq.s32.totalorder %s29, 3
      %p283 = por %p281, %p282
      %p284 = scmp.ne.s32.totalorder %s273, %s274
      %p285 = scmp.eq.s32.totalorder %s29, 0
      %p286 = por %p284, %p285
      %p287 = scmp.ne.s32.totalorder %s273, %s274
      %p288 = scmp.eq.s32.totalorder %s30, 3
      %p289 = por %p287, %p288
      %p291 = scmp.ne.s32.totalorder %s274, %s290
      %p292 = scmp.eq.s32.totalorder %s30, 0
      %p293 = por %p291, %p292
      %s294 = ssub.s32 %s32, %s39
      %p295 = scmp.eq.s32.totalorder %s294, 0
      %s297 = sadd.s32 %s296, 1
      %s298 = scalar_select %p295, %s296, %s297
      %p301 = pneg %p295
      %p302 = scmp.eq.s32.totalorder %s24, 3
      %p303 = por %p301, %p302
      %p304 = scmp.ne.s32.totalorder %s296, %s299
      %p305 = scmp.eq.s32.totalorder %s24, 0
      %p306 = por %p304, %p305
      %p307 = scmp.ne.s32.totalorder %s296, %s299
      %p308 = scmp.eq.s32.totalorder %s29, 3
      %p309 = por %p307, %p308
      %p310 = scmp.ne.s32.totalorder %s299, %s300
      %p311 = scmp.eq.s32.totalorder %s29, 0
      %p312 = por %p310, %p311
      %p313 = scmp.ne.s32.totalorder %s299, %s300
      %p314 = scmp.eq.s32.totalorder %s30, 3
      %p315 = por %p313, %p314
      %p317 = scmp.ne.s32.totalorder %s300, %s316
      %p318 = scmp.eq.s32.totalorder %s30, 0
      %p319 = por %p317, %p318
      %s320 = ssub.s32 %s32, %s39
      %p321 = scmp.eq.s32.totalorder %s320, 0
      %s323 = sadd.s32 %s322, 1
      %s324 = scalar_select %p321, %s322, %s323
      %p327 = pneg %p321
      %p328 = scmp.eq.s32.totalorder %s24, 3
      %p329 = por %p327, %p328
      %p330 = scmp.ne.s32.totalorder %s322, %s325
      %p331 = scmp.eq.s32.totalorder %s24, 0
      %p332 = por %p330, %p331
      %p333 = scmp.ne.s32.totalorder %s322, %s325
      %p334 = scmp.eq.s32.totalorder %s29, 3
      %p335 = por %p333, %p334
      %p336 = scmp.ne.s32.totalorder %s325, %s326
      %p337 = scmp.eq.s32.totalorder %s29, 0
      %p338 = por %p336, %p337
      %p339 = scmp.ne.s32.totalorder %s325, %s326
      %p340 = scmp.eq.s32.totalorder %s30, 3
      %p341 = por %p339, %p340
      %p343 = scmp.ne.s32.totalorder %s326, %s342
      %p344 = scmp.eq.s32.totalorder %s30, 0
      %p345 = por %p343, %p344
      %s346 = ssub.s32 %s32, %s39
      %p347 = scmp.eq.s32.totalorder %s346, 0
      %s349 = sadd.s32 %s348, 1
      %s350 = scalar_select %p347, %s348, %s349
      %p353 = pneg %p347
      %p354 = scmp.eq.s32.totalorder %s24, 3
      %p355 = por %p353, %p354
      %p356 = scmp.ne.s32.totalorder %s348, %s351
      %p357 = scmp.eq.s32.totalorder %s24, 0
      %p358 = por %p356, %p357
      %p359 = scmp.ne.s32.totalorder %s348, %s351
      %p360 = scmp.eq.s32.totalorder %s29, 3
      %p361 = por %p359, %p360
      %p362 = scmp.ne.s32.totalorder %s351, %s352
      %p363 = scmp.eq.s32.totalorder %s29, 0
      %p364 = por %p362, %p363
      %p365 = scmp.ne.s32.totalorder %s351, %s352
      %p366 = scmp.eq.s32.totalorder %s30, 3
      %p367 = por %p365, %p366
      %p369 = scmp.ne.s32.totalorder %s352, %s368
      %p370 = scmp.eq.s32.totalorder %s30, 0
      %p371 = por %p369, %p370
      %s372 = ssub.s32 %s32, %s39
      %p373 = scmp.eq.s32.totalorder %s372, 0
      %s375 = sadd.s32 %s374, 1
      %s376 = scalar_select %p373, %s374, %s375
      %p379 = pneg %p373
      %p380 = scmp.eq.s32.totalorder %s24, 3
      %p381 = por %p379, %p380
      %p382 = scmp.ne.s32.totalorder %s374, %s377
      %p383 = scmp.eq.s32.totalorder %s24, 0
      %p384 = por %p382, %p383
      %p385 = scmp.ne.s32.totalorder %s374, %s377
      %p386 = scmp.eq.s32.totalorder %s29, 3
      %p387 = por %p385, %p386
      %p388 = scmp.ne.s32.totalorder %s377, %s378
      %p389 = scmp.eq.s32.totalorder %s29, 0
      %p390 = por %p388, %p389
      %p391 = scmp.ne.s32.totalorder %s377, %s378
      %p392 = scmp.eq.s32.totalorder %s30, 3
      %p393 = por %p391, %p392
      %p395 = scmp.ne.s32.totalorder %s378, %s394
      %p396 = scmp.eq.s32.totalorder %s30, 0
      %p397 = por %p395, %p396
      %s398 = ssub.s32 %s32, %s39
      %p399 = scmp.eq.s32.totalorder %s398, 0
      %s401 = sadd.s32 %s400, 1
      %s402 = scalar_select %p399, %s400, %s401
      %p405 = pneg %p399
      %p406 = scmp.eq.s32.totalorder %s24, 3
      %p407 = por %p405, %p406
      %p408 = scmp.ne.s32.totalorder %s400, %s403
      %p409 = scmp.eq.s32.totalorder %s24, 0
      %p410 = por %p408, %p409
      %p411 = scmp.ne.s32.totalorder %s400, %s403
      %p412 = scmp.eq.s32.totalorder %s29, 3
      %p413 = por %p411, %p412
      %p414 = scmp.ne.s32.totalorder %s403, %s404
      %p415 = scmp.eq.s32.totalorder %s29, 0
      %p416 = por %p414, %p415
      %p417 = scmp.ne.s32.totalorder %s403, %s404
      %p418 = scmp.eq.s32.totalorder %s30, 3
      %p419 = por %p417, %p418
      %p421 = scmp.ne.s32.totalorder %s404, %s420
      %p422 = scmp.eq.s32.totalorder %s30, 0
      %p423 = por %p421, %p422
      %s424 = ssub.s32 %s32, %s39
      %p425 = scmp.eq.s32.totalorder %s424, 0
      %s427 = sadd.s32 %s426, 1
      %s428 = scalar_select %p425, %s426, %s427
      %p431 = pneg %p425
      %p432 = scmp.eq.s32.totalorder %s24, 3
      %p433 = por %p431, %p432
      %p434 = scmp.ne.s32.totalorder %s426, %s429
      %p435 = scmp.eq.s32.totalorder %s24, 0
      %p436 = por %p434, %p435
      %p437 = scmp.ne.s32.totalorder %s426, %s429
      %p438 = scmp.eq.s32.totalorder %s29, 3
      %p439 = por %p437, %p438
      %p440 = scmp.ne.s32.totalorder %s429, %s430
      %p441 = scmp.eq.s32.totalorder %s29, 0
      %p442 = por %p440, %p441
      %p443 = scmp.ne.s32.totalorder %s429, %s430
      %p444 = scmp.eq.s32.totalorder %s30, 3
      %p445 = por %p443, %p444
      %p447 = scmp.ne.s32.totalorder %s430, %s446
      %p448 = scmp.eq.s32.totalorder %s30, 0
      %p449 = por %p447, %p448
      %s450 = ssub.s32 %s31, %s43
      %p451 = scmp.eq.s32.totalorder %s450, 0
      %s453 = sadd.s32 %s452, 1
      %s454 = scalar_select %p451, %s452, %s453
      %p457 = pneg %p451
      %p458 = scmp.eq.s32.totalorder %s24, 3
      %p459 = por %p457, %p458
      %p460 = scmp.ne.s32.totalorder %s452, %s455
      %p461 = scmp.eq.s32.totalorder %s24, 0
      %p462 = por %p460, %p461
      %p463 = scmp.ne.s32.totalorder %s452, %s455
      %p464 = scmp.eq.s32.totalorder %s29, 3
      %p465 = por %p463, %p464
      %p466 = scmp.ne.s32.totalorder %s455, %s456
      %p467 = scmp.eq.s32.totalorder %s29, 0
      %p468 = por %p466, %p467
      %p469 = scmp.ne.s32.totalorder %s455, %s456
      %p470 = scmp.eq.s32.totalorder %s30, 3
      %p471 = por %p469, %p470
      %p473 = scmp.ne.s32.totalorder %s456, %s472
      %p474 = scmp.eq.s32.totalorder %s30, 0
      %p475 = por %p473, %p474
      %p476 = scmp.le.s32.totalorder 1, %s24
      %p477 = scmp.lt.s32.totalorder %s24, 5
      %p478 = pnand %p476, %p477
      %p479 = pneg %p478
      // Predicated region
      $region9: #{roberta_class_forward.2} parent=5 // pred_check
        _
      $region10: #{roberta_class_forward.2} parent=5 // pred_check_branch
        %481 = sbr.rel (%p478) target = $region12
      $region11: #{roberta_class_forward.2} parent=5 // pred_region
        %s482 = ssub.s32 %s24, 1
        // Predicated region
        $region13: #{roberta_class_forward.2} parent=11 // pred_check
          %p483 = pneg %p109
        $region14: #{roberta_class_forward.2} parent=11 // pred_check_branch
          %485 = sbr.rel (%p483) target = $region16
        $region15: #{roberta_class_forward.2} parent=11 // pred_region
          %s487 = ssub.s32 16, 16
          %488 = vsyncadd [#allocation3], %s487
          %s490 = sshll.u32 [#allocation2], 4
          %s491 = int_to_ptr.vmem [resolvable:$true] %s490
          %493 = dma.hbm_to_vmem [thread:$0]  %s2, 16, %s491, [#allocation3]
        $region16: #{roberta_class_forward.2} parent=11 // pred_fallthru
          _
        // Predicated region
        $region17: #{roberta_class_forward.2} parent=11 // pred_check
          %p494 = pneg %p130
        $region18: #{roberta_class_forward.2} parent=11 // pred_check_branch
          %496 = sbr.rel (%p494) target = $region20
        $region19: #{roberta_class_forward.2} parent=11 // pred_region
          %s498 = ssub.s32 16, 16
          %499 = vsyncadd [#allocation5], %s498
          %s501 = sshll.u32 [#allocation4], 4
          %s502 = int_to_ptr.vmem [resolvable:$true] %s501
          %504 = dma.hbm_to_vmem [thread:$0]  %s3, 16, %s502, [#allocation5]
        $region20: #{roberta_class_forward.2} parent=11 // pred_fallthru
          _
      $region12: #{roberta_class_forward.2} parent=5 // pred_fallthru
        _
      %p505 = scmp.lt.s32.totalorder %s24, 4
      // Predicated region
      $region21: #{roberta_class_forward.2} parent=5 // pred_check
        %p506 = pneg %p505
      $region22: #{roberta_class_forward.2} parent=5 // pred_check_branch
        %508 = sbr.rel (%p506) target = $region24
      $region23: #{roberta_class_forward.2} parent=5 // pred_region
        // Predicated region
        $region25: #{roberta_class_forward.2} parent=23 // pred_check
          %p509 = pneg %p56
        $region26: #{roberta_class_forward.2} parent=23 // pred_check_branch
          %511 = sbr.rel (%p509) target = $region28
        $region27: #{roberta_class_forward.2} parent=23 // pred_region
          %p512 = scmp.lt.s32.totalorder %s31, 1
          %s513 = scalar_select %p512, %s31, 1
          %s514 = smul.addr %s513, 8
          %s515 = scalar_lea.vmem %s0, %s514
        $region28: #{roberta_class_forward.2} parent=23 // pred_fallthru
          _
        // Predicated region
        $region29: #{roberta_class_forward.2} parent=23 // pred_check
          %p516 = pneg %p82
        $region30: #{roberta_class_forward.2} parent=23 // pred_check_branch
          %518 = sbr.rel (%p516) target = $region32
        $region31: #{roberta_class_forward.2} parent=23 // pred_region
          %p519 = scmp.lt.s32.totalorder %s31, 1
          %s520 = scalar_select %p519, %s31, 1
          %s521 = scalar_lea.vmem %s1, %s520
        $region32: #{roberta_class_forward.2} parent=23 // pred_fallthru
          _
        // Predicated region
        $region33: #{roberta_class_forward.2} parent=23 // pred_check
          %p522 = pneg %p150
        $region34: #{roberta_class_forward.2} parent=23 // pred_check_branch
          %524 = sbr.rel (%p522) target = $region36
        $region35: #{roberta_class_forward.2} parent=23 // pred_region
          %s525 = sand.u32 %s24, 1
          %s526 = scalar_lea.sflag [#allocation3], %s525
          %s527 = sand.u32 %s140, 1
          %s528 = smul.addr %s527, 192
          %s529 = scalar_lea.vmem [#allocation6], %s528
          %s531 = ssub.s32 3072, 3072
          %532 = vsyncadd %s526, %s531
          %s533 = smul.addr %s32, 48
          %s534 = smul.addr %s533, 64
          %s535 = scalar_lea.hbm %s4, %s534
          %s536 = sshll.u32 %s529, 4
          %s537 = int_to_ptr.vmem [resolvable:$true] %s536
          %542 = dma.hbm_to_vmem [thread:$0]  %s535, 3072, %s537, %s526, 192, 192, 12
        $region36: #{roberta_class_forward.2} parent=23 // pred_fallthru
          _
        // Predicated region
        $region37: #{roberta_class_forward.2} parent=23 // pred_check
          %p543 = pneg %p176
        $region38: #{roberta_class_forward.2} parent=23 // pred_check_branch
          %545 = sbr.rel (%p543) target = $region40
        $region39: #{roberta_class_forward.2} parent=23 // pred_region
          %s546 = sand.u32 %s24, 1
          %s547 = scalar_lea.sflag [#allocation3], %s546
          %s548 = sand.u32 %s166, 1
          %s549 = smul.addr %s548, 3
          %s550 = scalar_lea.vmem [#allocation7], %s549
          %s552 = ssub.s32 48, 48
          %553 = vsyncadd %s547, %s552
          %s554 = smul.addr %s32, 3
          %s555 = smul.addr %s554, 16
          %s556 = scalar_lea.hbm %s5, %s555
          %s558 = sshll.u32 %s550, 4
          %s559 = int_to_ptr.vmem [resolvable:$true] %s558
          %561 = dma.hbm_to_vmem [thread:$0]  %s556, 48, %s559, %s547
        $region40: #{roberta_class_forward.2} parent=23 // pred_fallthru
          _
        // Predicated region
        $region41: #{roberta_class_forward.2} parent=23 // pred_check
          %p562 = pneg %p202
        $region42: #{roberta_class_forward.2} parent=23 // pred_check_branch
          %564 = sbr.rel (%p562) target = $region44
        $region43: #{roberta_class_forward.2} parent=23 // pred_region
          %p565 = scmp.lt.s32.totalorder %s32, 1
          %s566 = scalar_select %p565, %s32, 1
          %s567 = smul.addr %s566, 16
          %s568 = smul.addr %s567, 4
          %s569 = scalar_lea.vmem %s6, %s568
        $region44: #{roberta_class_forward.2} parent=23 // pred_fallthru
          _
        // Predicated region
        $region45: #{roberta_class_forward.2} parent=23 // pred_check
          %p570 = pneg %p228
        $region46: #{roberta_class_forward.2} parent=23 // pred_check_branch
          %572 = sbr.rel (%p570) target = $region48
        $region47: #{roberta_class_forward.2} parent=23 // pred_region
          %s573 = sand.u32 %s24, 1
          %s574 = scalar_lea.sflag [#allocation3], %s573
          %s575 = sand.u32 %s218, 1
          %s576 = scalar_lea.vmem [#allocation8], %s575
          %s578 = ssub.s32 16, 16
          %579 = vsyncadd %s574, %s578
          %s580 = smul.addr %s32, 16
          %s581 = scalar_lea.hbm %s7, %s580
          %s583 = sshll.u32 %s576, 4
          %s584 = int_to_ptr.vmem [resolvable:$true] %s583
          %586 = dma.hbm_to_vmem [thread:$0]  %s581, 16, %s584, %s574
        $region48: #{roberta_class_forward.2} parent=23 // pred_fallthru
          _
        // Predicated region
        $region49: #{roberta_class_forward.2} parent=23 // pred_check
          %p587 = pneg %p254
        $region50: #{roberta_class_forward.2} parent=23 // pred_check_branch
          %589 = sbr.rel (%p587) target = $region52
        $region51: #{roberta_class_forward.2} parent=23 // pred_region
          %p590 = scmp.lt.s32.totalorder %s32, 1
          %s591 = scalar_select %p590, %s32, 1
          %s592 = scalar_lea.vmem %s8, %s591
        $region52: #{roberta_class_forward.2} parent=23 // pred_fallthru
          _
        // Predicated region
        $region53: #{roberta_class_forward.2} parent=23 // pred_check
          %p593 = pneg %p280
        $region54: #{roberta_class_forward.2} parent=23 // pred_check_branch
          %595 = sbr.rel (%p593) target = $region56
        $region55: #{roberta_class_forward.2} parent=23 // pred_region
          %p596 = scmp.lt.s32.totalorder %s32, 1
          %s597 = scalar_select %p596, %s32, 1
          %s598 = scalar_lea.vmem %s9, %s597
        $region56: #{roberta_class_forward.2} parent=23 // pred_fallthru
          _
        // Predicated region
        $region57: #{roberta_class_forward.2} parent=23 // pred_check
          %p599 = pneg %p306
        $region58: #{roberta_class_forward.2} parent=23 // pred_check_branch
          %601 = sbr.rel (%p599) target = $region60
        $region59: #{roberta_class_forward.2} parent=23 // pred_region
          %p602 = scmp.lt.s32.totalorder %s32, 1
          %s603 = scalar_select %p602, %s32, 1
          %s604 = smul.addr %s603, 32
          %s605 = smul.addr %s604, 4
          %s606 = scalar_lea.vmem %s10, %s605
        $region60: #{roberta_class_forward.2} parent=23 // pred_fallthru
          _
        // Predicated region
        $region61: #{roberta_class_forward.2} parent=23 // pred_check
          %p607 = pneg %p332
        $region62: #{roberta_class_forward.2} parent=23 // pred_check_branch
          %609 = sbr.rel (%p607) target = $region64
        $region63: #{roberta_class_forward.2} parent=23 // pred_region
          %s610 = sand.u32 %s24, 1
          %s611 = scalar_lea.sflag [#allocation3], %s610
          %s612 = sand.u32 %s322, 1
          %s613 = smul.addr %s612, 2
          %s614 = scalar_lea.vmem [#allocation9], %s613
          %s616 = ssub.s32 32, 32
          %617 = vsyncadd %s611, %s616
          %s618 = smul.addr %s32, 2
          %s619 = smul.addr %s618, 16
          %s620 = scalar_lea.hbm %s11, %s619
          %s622 = sshll.u32 %s614, 4
          %s623 = int_to_ptr.vmem [resolvable:$true] %s622
          %625 = dma.hbm_to_vmem [thread:$0]  %s620, 32, %s623, %s611
        $region64: #{roberta_class_forward.2} parent=23 // pred_fallthru
          _
        // Predicated region
        $region65: #{roberta_class_forward.2} parent=23 // pred_check
          %p626 = pneg %p358
        $region66: #{roberta_class_forward.2} parent=23 // pred_check_branch
          %628 = sbr.rel (%p626) target = $region68
        $region67: #{roberta_class_forward.2} parent=23 // pred_region
          %s629 = sand.u32 %s24, 1
          %s630 = scalar_lea.sflag [#allocation3], %s629
          %s631 = sand.u32 %s348, 1
          %s632 = smul.addr %s631, 128
          %s633 = scalar_lea.vmem [#allocation10], %s632
          %s635 = ssub.s32 2048, 2048
          %636 = vsyncadd %s630, %s635
          %s637 = smul.addr %s32, 32
          %s638 = smul.addr %s637, 64
          %s639 = scalar_lea.hbm %s12, %s638
          %s640 = sshll.u32 %s633, 4
          %s641 = int_to_ptr.vmem [resolvable:$true] %s640
          %646 = dma.hbm_to_vmem [thread:$0]  %s639, 2048, %s641, %s630, 64, 64, 4
        $region68: #{roberta_class_forward.2} parent=23 // pred_fallthru
          _
        // Predicated region
        $region69: #{roberta_class_forward.2} parent=23 // pred_check
          %p647 = pneg %p384
        $region70: #{roberta_class_forward.2} parent=23 // pred_check_branch
          %649 = sbr.rel (%p647) target = $region72
        $region71: #{roberta_class_forward.2} parent=23 // pred_region
          %s650 = sand.u32 %s24, 1
          %s651 = scalar_lea.sflag [#allocation3], %s650
          %s652 = sand.u32 %s374, 1
          %s653 = scalar_lea.vmem [#allocation11], %s652
          %s655 = ssub.s32 16, 16
          %656 = vsyncadd %s651, %s655
          %s657 = smul.addr %s32, 16
          %s658 = scalar_lea.hbm %s13, %s657
          %s660 = sshll.u32 %s653, 4
          %s661 = int_to_ptr.vmem [resolvable:$true] %s660
          %663 = dma.hbm_to_vmem [thread:$0]  %s658, 16, %s661, %s651
        $region72: #{roberta_class_forward.2} parent=23 // pred_fallthru
          _
        // Predicated region
        $region73: #{roberta_class_forward.2} parent=23 // pred_check
          %p664 = pneg %p410
        $region74: #{roberta_class_forward.2} parent=23 // pred_check_branch
          %666 = sbr.rel (%p664) target = $region76
        $region75: #{roberta_class_forward.2} parent=23 // pred_region
          %p667 = scmp.lt.s32.totalorder %s32, 1
          %s668 = scalar_select %p667, %s32, 1
          %s669 = scalar_lea.vmem %s14, %s668
        $region76: #{roberta_class_forward.2} parent=23 // pred_fallthru
          _
        // Predicated region
        $region77: #{roberta_class_forward.2} parent=23 // pred_check
          %p670 = pneg %p436
        $region78: #{roberta_class_forward.2} parent=23 // pred_check_branch
          %672 = sbr.rel (%p670) target = $region80
        $region79: #{roberta_class_forward.2} parent=23 // pred_region
          %p673 = scmp.lt.s32.totalorder %s32, 1
          %s674 = scalar_select %p673, %s32, 1
          %s675 = scalar_lea.vmem %s15, %s674
        $region80: #{roberta_class_forward.2} parent=23 // pred_fallthru
          _
      $region24: #{roberta_class_forward.2} parent=5 // pred_fallthru
        _
      %p676 = scmp.le.s32.totalorder 1, %s24
      %p677 = scmp.lt.s32.totalorder %s24, 5
      %p678 = pnand %p676, %p677
      %p679 = pneg %p678
      // Predicated region
      $region81: #{roberta_class_forward.2} parent=5 // pred_check
        _
      $region82: #{roberta_class_forward.2} parent=5 // pred_check_branch
        %681 = sbr.rel (%p678) target = $region84
      $region83: #{roberta_class_forward.2} parent=5 // pred_region
        %s682 = ssub.s32 %s24, 1
        // Predicated region
        $region85: #{roberta_class_forward.2} parent=83 // pred_check
          %p683 = pneg %p109
        $region86: #{roberta_class_forward.2} parent=83 // pred_check_branch
          %685 = sbr.rel (%p683) target = $region88
        $region87: #{roberta_class_forward.2} parent=83 // pred_region
          %686 = dma.done [#allocation3], 16
        $region88: #{roberta_class_forward.2} parent=83 // pred_fallthru
          _
        // Predicated region
        $region89: #{roberta_class_forward.2} parent=83 // pred_check
          %p687 = pneg %p130
        $region90: #{roberta_class_forward.2} parent=83 // pred_check_branch
          %689 = sbr.rel (%p687) target = $region92
        $region91: #{roberta_class_forward.2} parent=83 // pred_region
          %690 = dma.done [#allocation5], 16
        $region92: #{roberta_class_forward.2} parent=83 // pred_fallthru
          _
        %s691 = sand.u32 %s29, 1
        %s692 = scalar_lea.sflag [#allocation3], %s691
        %s693 = sand.u32 %s143, 1
        %s694 = smul.addr %s693, 192
        %s695 = scalar_lea.vmem [#allocation6], %s694
        // Predicated region
        $region93: #{roberta_class_forward.2} parent=83 // pred_check
          %p696 = pneg %p156
        $region94: #{roberta_class_forward.2} parent=83 // pred_check_branch
          %698 = sbr.rel (%p696) target = $region96
        $region95: #{roberta_class_forward.2} parent=83 // pred_region
          %699 = dma.done %s692, 3072
        $region96: #{roberta_class_forward.2} parent=83 // pred_fallthru
          _
        %s700 = sand.u32 %s29, 1
        %s701 = scalar_lea.sflag [#allocation3], %s700
        %s702 = sand.u32 %s169, 1
        %s703 = smul.addr %s702, 3
        %s704 = scalar_lea.vmem [#allocation7], %s703
        // Predicated region
        $region97: #{roberta_class_forward.2} parent=83 // pred_check
          %p705 = pneg %p182
        $region98: #{roberta_class_forward.2} parent=83 // pred_check_branch
          %707 = sbr.rel (%p705) target = $region100
        $region99: #{roberta_class_forward.2} parent=83 // pred_region
          %708 = dma.done %s701, 48
        $region100: #{roberta_class_forward.2} parent=83 // pred_fallthru
          _
        %s709 = sand.u32 %s29, 1
        %s710 = scalar_lea.sflag [#allocation3], %s709
        %s711 = sand.u32 %s221, 1
        %s712 = scalar_lea.vmem [#allocation8], %s711
        // Predicated region
        $region101: #{roberta_class_forward.2} parent=83 // pred_check
          %p713 = pneg %p234
        $region102: #{roberta_class_forward.2} parent=83 // pred_check_branch
          %715 = sbr.rel (%p713) target = $region104
        $region103: #{roberta_class_forward.2} parent=83 // pred_region
          %716 = dma.done %s710, 16
        $region104: #{roberta_class_forward.2} parent=83 // pred_fallthru
          _
        %s717 = sand.u32 %s29, 1
        %s718 = scalar_lea.sflag [#allocation3], %s717
        %s719 = sand.u32 %s325, 1
        %s720 = smul.addr %s719, 2
        %s721 = scalar_lea.vmem [#allocation9], %s720
        // Predicated region
        $region105: #{roberta_class_forward.2} parent=83 // pred_check
          %p722 = pneg %p338
        $region106: #{roberta_class_forward.2} parent=83 // pred_check_branch
          %724 = sbr.rel (%p722) target = $region108
        $region107: #{roberta_class_forward.2} parent=83 // pred_region
          %725 = dma.done %s718, 32
        $region108: #{roberta_class_forward.2} parent=83 // pred_fallthru
          _
        %s726 = sand.u32 %s29, 1
        %s727 = scalar_lea.sflag [#allocation3], %s726
        %s728 = sand.u32 %s351, 1
        %s729 = smul.addr %s728, 128
        %s730 = scalar_lea.vmem [#allocation10], %s729
        // Predicated region
        $region109: #{roberta_class_forward.2} parent=83 // pred_check
          %p731 = pneg %p364
        $region110: #{roberta_class_forward.2} parent=83 // pred_check_branch
          %733 = sbr.rel (%p731) target = $region112
        $region111: #{roberta_class_forward.2} parent=83 // pred_region
          %734 = dma.done %s727, 2048
        $region112: #{roberta_class_forward.2} parent=83 // pred_fallthru
          _
        %s735 = sand.u32 %s29, 1
        %s736 = scalar_lea.sflag [#allocation3], %s735
        %s737 = sand.u32 %s377, 1
        %s738 = scalar_lea.vmem [#allocation11], %s737
        // Predicated region
        $region113: #{roberta_class_forward.2} parent=83 // pred_check
          %p739 = pneg %p390
        $region114: #{roberta_class_forward.2} parent=83 // pred_check_branch
          %741 = sbr.rel (%p739) target = $region116
        $region115: #{roberta_class_forward.2} parent=83 // pred_region
          %742 = dma.done %s736, 16
        $region116: #{roberta_class_forward.2} parent=83 // pred_fallthru
          _
        %p743 = scmp.lt.s32.totalorder %s33, 1
        %s744 = scalar_select %p743, %s33, 1
        %s745 = smul.addr %s744, 8
        %s746 = scalar_lea.vmem %s0, %s745
        %p747 = pneg %p62
        %p748 = pneg %p59
        %p749 = scmp.lt.s32.totalorder %s33, 1
        %s750 = scalar_select %p749, %s33, 1
        %s751 = scalar_lea.vmem %s1, %s750
        %p752 = pneg %p88
        %p753 = pneg %p85
        %p754 = pneg %p109
        %p755 = pneg %p106
        %p756 = pneg %p130
        %p757 = pneg %p127
        %s758 = sand.u32 %s29, 1
        %s759 = scalar_lea.sflag [#allocation3], %s758
        %s760 = sand.u32 %s143, 1
        %s761 = smul.addr %s760, 192
        %s762 = scalar_lea.vmem [#allocation6], %s761
        %p763 = pneg %p156
        %p764 = pneg %p153
        %s765 = sand.u32 %s29, 1
        %s766 = scalar_lea.sflag [#allocation3], %s765
        %s767 = sand.u32 %s169, 1
        %s768 = smul.addr %s767, 3
        %s769 = scalar_lea.vmem [#allocation7], %s768
        %p770 = pneg %p182
        %p771 = pneg %p179
        %p772 = scmp.lt.s32.totalorder %s34, 1
        %s773 = scalar_select %p772, %s34, 1
        %s774 = smul.addr %s773, 16
        %s775 = smul.addr %s774, 4
        %s776 = scalar_lea.vmem %s6, %s775
        %p777 = pneg %p208
        %p778 = pneg %p205
        %s779 = sand.u32 %s29, 1
        %s780 = scalar_lea.sflag [#allocation3], %s779
        %s781 = sand.u32 %s221, 1
        %s782 = scalar_lea.vmem [#allocation8], %s781
        %p783 = pneg %p234
        %p784 = pneg %p231
        %p785 = scmp.lt.s32.totalorder %s34, 1
        %s786 = scalar_select %p785, %s34, 1
        %s787 = scalar_lea.vmem %s8, %s786
        %p788 = pneg %p260
        %p789 = pneg %p257
        %p790 = scmp.lt.s32.totalorder %s34, 1
        %s791 = scalar_select %p790, %s34, 1
        %s792 = scalar_lea.vmem %s9, %s791
        %p793 = pneg %p286
        %p794 = pneg %p283
        %p795 = scmp.lt.s32.totalorder %s34, 1
        %s796 = scalar_select %p795, %s34, 1
        %s797 = smul.addr %s796, 32
        %s798 = smul.addr %s797, 4
        %s799 = scalar_lea.vmem %s10, %s798
        %p800 = pneg %p312
        %p801 = pneg %p309
        %s802 = sand.u32 %s29, 1
        %s803 = scalar_lea.sflag [#allocation3], %s802
        %s804 = sand.u32 %s325, 1
        %s805 = smul.addr %s804, 2
        %s806 = scalar_lea.vmem [#allocation9], %s805
        %p807 = pneg %p338
        %p808 = pneg %p335
        %s809 = sand.u32 %s29, 1
        %s810 = scalar_lea.sflag [#allocation3], %s809
        %s811 = sand.u32 %s351, 1
        %s812 = smul.addr %s811, 128
        %s813 = scalar_lea.vmem [#allocation10], %s812
        %p814 = pneg %p364
        %p815 = pneg %p361
        %s816 = sand.u32 %s29, 1
        %s817 = scalar_lea.sflag [#allocation3], %s816
        %s818 = sand.u32 %s377, 1
        %s819 = scalar_lea.vmem [#allocation11], %s818
        %p820 = pneg %p390
        %p821 = pneg %p387
        %p822 = scmp.lt.s32.totalorder %s34, 1
        %s823 = scalar_select %p822, %s34, 1
        %s824 = scalar_lea.vmem %s14, %s823
        %p825 = pneg %p416
        %p826 = pneg %p413
        %p827 = scmp.lt.s32.totalorder %s34, 1
        %s828 = scalar_select %p827, %s34, 1
        %s829 = scalar_lea.vmem %s15, %s828
        %p830 = pneg %p442
        %p831 = pneg %p439
        %p832 = pneg %p468
        %p833 = pneg %p465
        %p834 = scmp.lt.s32.totalorder %s33, 1
        %s835 = scalar_select %p834, %s33, 1
        %s836 = smul.addr %s835, 8
        %s837 = scalar_lea.vmem %s16, %s836
        %p838 = scmp.lt.s32.totalorder %s33, 1
        %s839 = scalar_select %p838, %s33, 1
        %s840 = smul.addr %s839, 8
        %s841 = scalar_lea.vmem %s0, %s840
        %p842 = scmp.lt.s32.totalorder %s33, 1
        %s843 = scalar_select %p842, %s33, 1
        %s844 = scalar_lea.vmem %s1, %s843
        %p845 = scmp.lt.s32.totalorder %s34, 1
        %s846 = scalar_select %p845, %s34, 1
        %s847 = smul.addr %s846, 16
        %s848 = smul.addr %s847, 4
        %s849 = scalar_lea.vmem %s6, %s848
        %p850 = scmp.lt.s32.totalorder %s34, 1
        %s851 = scalar_select %p850, %s34, 1
        %s852 = scalar_lea.vmem %s8, %s851
        %p853 = scmp.lt.s32.totalorder %s34, 1
        %s854 = scalar_select %p853, %s34, 1
        %s855 = scalar_lea.vmem %s9, %s854
        %p856 = scmp.lt.s32.totalorder %s34, 1
        %s857 = scalar_select %p856, %s34, 1
        %s858 = smul.addr %s857, 32
        %s859 = smul.addr %s858, 4
        %s860 = scalar_lea.vmem %s10, %s859
        %p861 = scmp.lt.s32.totalorder %s34, 1
        %s862 = scalar_select %p861, %s34, 1
        %s863 = scalar_lea.vmem %s14, %s862
        %p864 = scmp.lt.s32.totalorder %s34, 1
        %s865 = scalar_select %p864, %s34, 1
        %s866 = scalar_lea.vmem %s15, %s865
        %p867 = scmp.lt.s32.totalorder %s33, 1
        %s868 = scalar_select %p867, %s33, 1
        %s869 = smul.addr %s868, 8
        %s870 = scalar_lea.vmem %s16, %s869
        %p872 = scmp.eq.s32.totalorder %s34, 0
        // Predicated region
        $region117: #{roberta_class_forward.2} parent=83 // pred_check
          %p873 = pneg %p872
        $region118: #{roberta_class_forward.2} parent=83 // pred_check_branch
          %875 = sbr.rel (%p873) target = $region120
        $region119: #{roberta_class_forward.2} parent=83 // pred_region
          %v876 = vld [vmem:[%s841] sm:$0xff]
          %v877 = vld [vmem:[#allocation2] sm:$0x1]
          %v878 = vld [vmem:[#allocation4] sm:$0x1]
          %879 = vadd.xlane.f32.xlu0 %v876
          %v880 = vpop.xlane.xlu0 %879
          %v881 = vrcp.pop 128.0
          %v882 = vmul.f32 %v880, %v881
          %v883 = vsub.f32 %v876, %v882
          %v884 = vmul.f32 %v883, %v883
          %885 = vadd.xlane.f32.xlu0 %v884
          %v886 = vpop.xlane.xlu0 %885
          %v887 = vmul.f32 %v886, %v881
          %v888 = vadd.f32 %v887, 1e-05
          %v889 = vrsqrt.pop %v888
          %v890 = vmul.f32 %v883, %v889
          %v892 = vlaneseq
          %v893 = vshrl.u32 %v892, 7
          %v894 = vsub.s32 0, %v893
          %v895 = vrot.slane %v877, %v894
          %v897 = vmul.f32 %v890, %v895
          %v899 = vlaneseq
          %v900 = vshrl.u32 %v899, 7
          %v901 = vsub.s32 0, %v900
          %v902 = vrot.slane %v878, %v901
          %v904 = vadd.f32 %v897, %v902
          %905 = vst [vmem:[%s870] sm:$0xff] %v904
        $region120: #{roberta_class_forward.2} parent=83 // pred_fallthru
          _
        %v906 = vld [vmem:[%s870] sm:$0xff]
        %v907 = vpack.c.bf16 %v906, %v906
        %v908 = vld [vmem:[%s695] sm:$0xff]
        %v909 = vld [vmem:[%s695 + $0x8] sm:$0xf]
        %v910 = vld [vmem:[%s695 + $0xc] sm:$0xff]
        %v911 = vld [vmem:[%s695 + $0x14] sm:$0xf]
        %v912 = vld [vmem:[%s695 + $0x18] sm:$0xff]
        %v913 = vld [vmem:[%s695 + $0x20] sm:$0xf]
        %v914 = vld [vmem:[%s695 + $0x24] sm:$0xff]
        %v915 = vld [vmem:[%s695 + $0x2c] sm:$0xf]
        %v916 = vld [vmem:[%s695 + $0x30] sm:$0xff]
        %v917 = vld [vmem:[%s695 + $0x38] sm:$0xf]
        %v918 = vld [vmem:[%s695 + $0x3c] sm:$0xff]
        %v919 = vld [vmem:[%s695 + $0x44] sm:$0xf]
        %v920 = vld [vmem:[%s695 + $0x48] sm:$0xff]
        %v921 = vld [vmem:[%s695 + $0x50] sm:$0xf]
        %v922 = vld [vmem:[%s695 + $0x54] sm:$0xff]
        %v923 = vld [vmem:[%s695 + $0x5c] sm:$0xf]
        %v924 = vld [vmem:[%s695 + $0x60] sm:$0xff]
        %v925 = vld [vmem:[%s695 + $0x68] sm:$0xf]
        %v926 = vld [vmem:[%s695 + $0x6c] sm:$0xff]
        %v927 = vld [vmem:[%s695 + $0x74] sm:$0xf]
        %v928 = vld [vmem:[%s695 + $0x78] sm:$0xff]
        %v929 = vld [vmem:[%s695 + $0x80] sm:$0xf]
        %v930 = vld [vmem:[%s695 + $0x84] sm:$0xff]
        %v931 = vld [vmem:[%s695 + $0x8c] sm:$0xf]
        %v932 = vld [vmem:[%s695 + $0x90] sm:$0xff]
        %v933 = vld [vmem:[%s695 + $0x98] sm:$0xf]
        %v934 = vld [vmem:[%s695 + $0x9c] sm:$0xff]
        %v935 = vld [vmem:[%s695 + $0xa4] sm:$0xf]
        %v936 = vld [vmem:[%s695 + $0xa8] sm:$0xff]
        %v937 = vld [vmem:[%s695 + $0xb0] sm:$0xf]
        %v938 = vld [vmem:[%s695 + $0xb4] sm:$0xff]
        %v939 = vld [vmem:[%s695 + $0xbc] sm:$0xf]
        %v940 = vld [vmem:[%s704] sm:$0x7]
        %v942 = vlaneseq
        %v943 = vshrl.u32 %v942, 7
        %v944 = vsub.s32 0, %v943
        %v945 = vrot.slane %v940, %v944
        %v946 = vlaneseq
        %v947 = vshrl.u32 %v946, 7
        %v948 = vsub.s32 1, %v947
        %v949 = vrot.slane %v940, %v948
        %v950 = vlaneseq
        %v951 = vshrl.u32 %v950, 7
        %v952 = vsub.s32 2, %v951
        %v953 = vrot.slane %v940, %v952
        %v989 = vunpack.c.l.b16 %v908
        %v990 = vunpack.c.h.b16 %v908
        %v991 = vunpack.c.l.b16 %v909
        %v992 = vunpack.c.l.b16 %v910
        %v993 = vunpack.c.h.b16 %v910
        %v994 = vunpack.c.l.b16 %v911
        %v995 = vunpack.c.l.b16 %v912
        %v996 = vunpack.c.h.b16 %v912
        %v997 = vunpack.c.l.b16 %v913
        %v998 = vunpack.c.l.b16 %v914
        %v999 = vunpack.c.h.b16 %v914
        %v1000 = vunpack.c.l.b16 %v915
        %v1001 = vunpack.c.l.b16 %v916
        %v1002 = vunpack.c.h.b16 %v916
        %v1003 = vunpack.c.l.b16 %v917
        %v1004 = vunpack.c.l.b16 %v918
        %v1005 = vunpack.c.h.b16 %v918
        %v1006 = vunpack.c.l.b16 %v919
        %v1007 = vunpack.c.l.b16 %v920
        %v1008 = vunpack.c.h.b16 %v920
        %v1009 = vunpack.c.l.b16 %v921
        %v1010 = vunpack.c.l.b16 %v922
        %v1011 = vunpack.c.h.b16 %v922
        %v1012 = vunpack.c.l.b16 %v923
        %v1013 = vunpack.c.l.b16 %v924
        %v1014 = vunpack.c.h.b16 %v924
        %v1015 = vunpack.c.l.b16 %v925
        %v1016 = vunpack.c.l.b16 %v926
        %v1017 = vunpack.c.h.b16 %v926
        %v1018 = vunpack.c.l.b16 %v927
        %v1019 = vunpack.c.l.b16 %v928
        %v1020 = vunpack.c.h.b16 %v928
        %v1021 = vunpack.c.l.b16 %v929
        %v1022 = vunpack.c.l.b16 %v930
        %v1023 = vunpack.c.h.b16 %v930
        %v1024 = vunpack.c.l.b16 %v931
        %v1025 = vunpack.c.l.b16 %v932
        %v1026 = vunpack.c.h.b16 %v932
        %v1027 = vunpack.c.l.b16 %v933
        %v1028 = vunpack.c.l.b16 %v934
        %v1029 = vunpack.c.h.b16 %v934
        %v1030 = vunpack.c.l.b16 %v935
        %v1031 = vunpack.c.l.b16 %v936
        %v1032 = vunpack.c.h.b16 %v936
        %v1033 = vunpack.c.l.b16 %v937
        %v1034 = vunpack.c.l.b16 %v938
        %v1035 = vunpack.c.h.b16 %v938
        %v1036 = vunpack.c.l.b16 %v939
        %v1037 = vpack.c.b16 %v992, %v989
        %v1038 = vpack.c.b16 %v993, %v990
        %v1039 = vpack.c.b16 %v994, %v991
        %v1040 = vpack.c.b16 %v998, %v995
        %v1041 = vpack.c.b16 %v999, %v996
        %v1042 = vpack.c.b16 %v1000, %v997
        %v1043 = vpack.c.b16 %v1004, %v1001
        %v1044 = vpack.c.b16 %v1005, %v1002
        %v1045 = vpack.c.b16 %v1006, %v1003
        %v1046 = vpack.c.b16 %v1010, %v1007
        %v1047 = vpack.c.b16 %v1011, %v1008
        %v1048 = vpack.c.b16 %v1012, %v1009
        %v1049 = vpack.c.b16 %v1016, %v1013
        %v1050 = vpack.c.b16 %v1017, %v1014
        %v1051 = vpack.c.b16 %v1018, %v1015
        %v1052 = vpack.c.b16 %v1022, %v1019
        %v1053 = vpack.c.b16 %v1023, %v1020
        %v1054 = vpack.c.b16 %v1024, %v1021
        %v1055 = vpack.c.b16 %v1028, %v1025
        %v1056 = vpack.c.b16 %v1029, %v1026
        %v1057 = vpack.c.b16 %v1030, %v1027
        %v1058 = vpack.c.b16 %v1034, %v1031
        %v1059 = vpack.c.b16 %v1035, %v1032
        %v1060 = vpack.c.b16 %v1036, %v1033
        %1085 = vmatprep.subr.bf16.mxu0 %v1059
        %1086 = vmatpush1.bf16.msra.mxu0 %v1058
        %1087 = vmatprep.subr.bf16.mxu0 %v1056
        %1088 = vmatpush1.bf16.msra.mxu0 %v1055
        %1089 = vmatprep.subr.bf16.mxu0 %v1053
        %1090 = vmatpush1.bf16.msra.mxu0 %v1052
        %1091 = vmatprep.subr.bf16.mxu0 %v1050
        %1092 = vmatpush1.bf16.msra.mxu0 %v1049
        %1093 = vmatprep.subr.bf16.mxu0 %v1047
        %1094 = vmatpush1.bf16.msra.mxu0 %v1046
        %1095 = vmatprep.subr.bf16.mxu0 %v1044
        %1096 = vmatpush1.bf16.msra.mxu0 %v1043
        %1097 = vmatprep.subr.bf16.mxu0 %v1041
        %1098 = vmatpush1.bf16.msra.mxu0 %v1040
        %1099 = vmatprep.subr.bf16.mxu0 %v1038
        %1100 = vmatpush1.bf16.msra.mxu0 %v1037
        %1101 = vmatprep.subr.bf16.mxu0 0
        %1102 = vmatpush2.bf16.msra.mxu0 0
        %1103 = vmatprep.subr.bf16.mxu0 0
        %1104 = vmatpush2.bf16.msra.mxu0 0
        %1105 = vmatprep.subr.bf16.mxu0 0
        %1106 = vmatpush2.bf16.msra.mxu0 0
        %1107 = vmatprep.subr.bf16.mxu0 0
        %1108 = vmatpush2.bf16.msra.mxu0 0
        %1109 = vmatprep.subr.bf16.mxu0 0
        %1110 = vmatpush2.bf16.msra.mxu0 0
        %1111 = vmatprep.subr.bf16.mxu0 0
        %1112 = vmatpush2.bf16.msra.mxu0 0
        %1113 = vmatprep.subr.bf16.mxu0 0
        %1114 = vmatpush2.bf16.msra.mxu0 0
        %1115 = vmatprep.subr.bf16.mxu0 0
        %1116 = vmatpush2.bf16.msra.mxu0 0
        %1117 = vmatprep.mubr.bf16.mxu0 0
        %1118 = vmatmul.mubr.bf16.gmra.mxu0 %v907
        %v1119 = vpop.f32.mrf.mxu0
        %v1120 = vadd.f32 %v945, %v1119
        %v1121 = vpop.f32.mrf.mxu0
        %v1122 = vadd.f32 %v949, %v1121
        %v1123 = vpop.f32.mrf.mxu0
        %v1124 = vpop.f32.mrf.mxu0
        %1125 = vdwg.mxu0
        %1126 = vmatprep.subr.bf16.mxu0 0
        %1127 = vmatpush1.bf16.msra.mxu0 %v1060
        %1128 = vmatprep.subr.bf16.mxu0 0
        %1129 = vmatpush1.bf16.msra.mxu0 %v1057
        %1130 = vmatprep.subr.bf16.mxu0 0
        %1131 = vmatpush1.bf16.msra.mxu0 %v1054
        %1132 = vmatprep.subr.bf16.mxu0 0
        %1133 = vmatpush1.bf16.msra.mxu0 %v1051
        %1134 = vmatprep.subr.bf16.mxu0 0
        %1135 = vmatpush1.bf16.msra.mxu0 %v1048
        %1136 = vmatprep.subr.bf16.mxu0 0
        %1137 = vmatpush1.bf16.msra.mxu0 %v1045
        %1138 = vmatprep.subr.bf16.mxu0 0
        %1139 = vmatpush1.bf16.msra.mxu0 %v1042
        %1140 = vmatprep.subr.bf16.mxu0 0
        %1141 = vmatpush1.bf16.msra.mxu0 %v1039
        %1142 = vmatprep.subr.bf16.mxu0 0
        %1143 = vmatpush2.bf16.msra.mxu0 0
        %1144 = vmatprep.subr.bf16.mxu0 0
        %1145 = vmatpush2.bf16.msra.mxu0 0
        %1146 = vmatprep.subr.bf16.mxu0 0
        %1147 = vmatpush2.bf16.msra.mxu0 0
        %1148 = vmatprep.subr.bf16.mxu0 0
        %1149 = vmatpush2.bf16.msra.mxu0 0
        %1150 = vmatprep.subr.bf16.mxu0 0
        %1151 = vmatpush2.bf16.msra.mxu0 0
        %1152 = vmatprep.subr.bf16.mxu0 0
        %1153 = vmatpush2.bf16.msra.mxu0 0
        %1154 = vmatprep.subr.bf16.mxu0 0
        %1155 = vmatpush2.bf16.msra.mxu0 0
        %1156 = vmatprep.subr.bf16.mxu0 0
        %1157 = vmatpush2.bf16.msra.mxu0 0
        %1158 = vmatprep.mubr.bf16.mxu0 0
        %1159 = vmatmul.mubr.bf16.gmra.mxu0 %v907
        %v1160 = vpop.f32.mrf.mxu0
        %v1161 = vadd.f32 %v953, %v1160
        %v1162 = vpop.f32.mrf.mxu0
        %v1163 = vpop.f32.mrf.mxu0
        %v1164 = vpop.f32.mrf.mxu0
        %1165 = vdwg.mxu0
        %v1166 = vld [vmem:[%s844] sm:$0x1]
        %v1167 = vpack.c.bf16 %v1120, %v1120
        %v1168 = vpack.c.bf16 %v1122, %v1122
        %v1169 = vpack.c.bf16 %v1161, %v1161
        %vm1170 = vcmask 261120
        %v1172 = vsel %vm1170, %v1167, 0
        %v1175 = vsel %vm1170, %v1168, 0
        %1177 = vmatprep.subr.bf16.mxu0 0
        %1178 = vmatpush1.bf16.xpose.msra.mxu0 0
        %1179 = vmatprep.subr.bf16.mxu0 0
        %1180 = vmatpush1.bf16.xpose.msra.mxu0 0
        %1181 = vmatprep.subr.bf16.mxu0 0
        %1182 = vmatpush1.bf16.xpose.msra.mxu0 0
        %1183 = vmatprep.subr.bf16.mxu0 0
        %1184 = vmatpush1.bf16.xpose.msra.mxu0 0
        %1185 = vmatprep.subr.bf16.mxu0 0
        %1186 = vmatpush1.bf16.xpose.msra.mxu0 0
        %1187 = vmatprep.subr.bf16.mxu0 0
        %1188 = vmatpush1.bf16.xpose.msra.mxu0 0
        %1189 = vmatprep.subr.bf16.mxu0 0
        %1190 = vmatpush1.bf16.xpose.msra.mxu0 0
        %1191 = vmatprep.subr.bf16.mxu0 0
        %1192 = vmatpush1.bf16.xpose.msra.mxu0 %v1175
        %1193 = vmatprep.subr.bf16.mxu0 0
        %1194 = vmatpush2.bf16.xpose.msra.mxu0 0
        %1195 = vmatprep.subr.bf16.mxu0 0
        %1196 = vmatpush2.bf16.xpose.msra.mxu0 0
        %1197 = vmatprep.subr.bf16.mxu0 0
        %1198 = vmatpush2.bf16.xpose.msra.mxu0 0
        %1199 = vmatprep.subr.bf16.mxu0 0
        %1200 = vmatpush2.bf16.xpose.msra.mxu0 0
        %1201 = vmatprep.subr.bf16.mxu0 0
        %1202 = vmatpush2.bf16.xpose.msra.mxu0 0
        %1203 = vmatprep.subr.bf16.mxu0 0
        %1204 = vmatpush2.bf16.xpose.msra.mxu0 0
        %1205 = vmatprep.subr.bf16.mxu0 0
        %1206 = vmatpush2.bf16.xpose.msra.mxu0 0
        %1207 = vmatprep.subr.bf16.mxu0 0
        %1208 = vmatpush2.bf16.xpose.msra.mxu0 0
        %1209 = vmatprep.mubr.bf16.mxu0 0
        %1210 = vmatmul.mubr.bf16.gmra.mxu0 %v1172
        %v1211 = vpop.f32.mrf.mxu0
        %v1212 = vadd.f32 0.0, %v1211
        %v1213 = vpop.f32.mrf.mxu0
        %v1214 = vpop.f32.mrf.mxu0
        %v1215 = vpop.f32.mrf.mxu0
        %1216 = vdwg.mxu0
        %v1217 = vmul.f32 %v1212, 0.17677669
        %v1219 = vlaneseq
        %v1220 = vshrl.u32 %v1219, 7
        %v1221 = vsub.s32 0, %v1220
        %v1222 = vrot.slane %v1166, %v1221
        %v1224 = vadd.f32 %v1217, %v1222
        %vm1225 = vcmask 64512
        %v1226 = vsel %vm1225, %v1224, -inf
        %1227 = vmax.xlane.f32.xlu0 %v1226
        %v1228 = vpop.xlane.xlu0 %1227
        %v1229 = vsub.f32 %v1224, %v1228
        %v1230 = vmul.f32 %v1229, 1.442695
        %v1231 = vpow.pop %v1230
        %v1232 = vsel %vm1225, %v1231, 0.0
        %1233 = vadd.xlane.f32.xlu0 %v1232
        %v1234 = vpop.xlane.xlu0 %1233
        %v1235 = vrcp.pop %v1234
        %v1236 = vmul.f32 %v1231, %v1235
        %v1237 = vpack.c.bf16 %v1236, %v1236
        %v1239 = vsel %vm1225, %v1237, 0
        %vm1241 = vcmask 1043456
        %v1243 = vsel %vm1241, %v1169, 0
        %1245 = vmatprep.subr.bf16.mxu0 0
        %1246 = vmatpush1.bf16.msra.mxu0 0
        %1247 = vmatprep.subr.bf16.mxu0 0
        %1248 = vmatpush1.bf16.msra.mxu0 0
        %1249 = vmatprep.subr.bf16.mxu0 0
        %1250 = vmatpush1.bf16.msra.mxu0 0
        %1251 = vmatprep.subr.bf16.mxu0 0
        %1252 = vmatpush1.bf16.msra.mxu0 0
        %1253 = vmatprep.subr.bf16.mxu0 0
        %1254 = vmatpush1.bf16.msra.mxu0 0
        %1255 = vmatprep.subr.bf16.mxu0 0
        %1256 = vmatpush1.bf16.msra.mxu0 0
        %1257 = vmatprep.subr.bf16.mxu0 0
        %1258 = vmatpush1.bf16.msra.mxu0 0
        %1259 = vmatprep.subr.bf16.mxu0 0
        %1260 = vmatpush1.bf16.msra.mxu0 %v1243
        %1261 = vmatprep.subr.bf16.mxu0 0
        %1262 = vmatpush2.bf16.msra.mxu0 0
        %1263 = vmatprep.subr.bf16.mxu0 0
        %1264 = vmatpush2.bf16.msra.mxu0 0
        %1265 = vmatprep.subr.bf16.mxu0 0
        %1266 = vmatpush2.bf16.msra.mxu0 0
        %1267 = vmatprep.subr.bf16.mxu0 0
        %1268 = vmatpush2.bf16.msra.mxu0 0
        %1269 = vmatprep.subr.bf16.mxu0 0
        %1270 = vmatpush2.bf16.msra.mxu0 0
        %1271 = vmatprep.subr.bf16.mxu0 0
        %1272 = vmatpush2.bf16.msra.mxu0 0
        %1273 = vmatprep.subr.bf16.mxu0 0
        %1274 = vmatpush2.bf16.msra.mxu0 0
        %1275 = vmatprep.subr.bf16.mxu0 0
        %1276 = vmatpush2.bf16.msra.mxu0 0
        %1277 = vmatprep.mubr.bf16.mxu0 0
        %1278 = vmatmul.mubr.bf16.gmra.mxu0 %v1239
        %v1279 = vpop.f32.mrf.mxu0
        %v1280 = vadd.f32 0.0, %v1279
        %v1281 = vpop.f32.mrf.mxu0
        %v1282 = vpop.f32.mrf.mxu0
        %v1283 = vpop.f32.mrf.mxu0
        %1284 = vdwg.mxu0
        %1286 = vrot.lane.b32.xlu0 %v1167, 96
        %v1287 = vpop.permute.xlu0 %1286
        %1289 = vrot.lane.b32.xlu0 %v1168, 96
        %v1290 = vpop.permute.xlu0 %1289
        %v1292 = vsel %vm1170, %v1287, 0
        %v1295 = vsel %vm1170, %v1290, 0
        %1297 = vmatprep.subr.bf16.mxu0 0
        %1298 = vmatpush1.bf16.xpose.msra.mxu0 0
        %1299 = vmatprep.subr.bf16.mxu0 0
        %1300 = vmatpush1.bf16.xpose.msra.mxu0 0
        %1301 = vmatprep.subr.bf16.mxu0 0
        %1302 = vmatpush1.bf16.xpose.msra.mxu0 0
        %1303 = vmatprep.subr.bf16.mxu0 0
        %1304 = vmatpush1.bf16.xpose.msra.mxu0 0
        %1305 = vmatprep.subr.bf16.mxu0 0
        %1306 = vmatpush1.bf16.xpose.msra.mxu0 0
        %1307 = vmatprep.subr.bf16.mxu0 0
        %1308 = vmatpush1.bf16.xpose.msra.mxu0 0
        %1309 = vmatprep.subr.bf16.mxu0 0
        %1310 = vmatpush1.bf16.xpose.msra.mxu0 0
        %1311 = vmatprep.subr.bf16.mxu0 0
        %1312 = vmatpush1.bf16.xpose.msra.mxu0 %v1295
        %1313 = vmatprep.subr.bf16.mxu0 0
        %1314 = vmatpush2.bf16.xpose.msra.mxu0 0
        %1315 = vmatprep.subr.bf16.mxu0 0
        %1316 = vmatpush2.bf16.xpose.msra.mxu0 0
        %1317 = vmatprep.subr.bf16.mxu0 0
        %1318 = vmatpush2.bf16.xpose.msra.mxu0 0
        %1319 = vmatprep.subr.bf16.mxu0 0
        %1320 = vmatpush2.bf16.xpose.msra.mxu0 0
        %1321 = vmatprep.subr.bf16.mxu0 0
        %1322 = vmatpush2.bf16.xpose.msra.mxu0 0
        %1323 = vmatprep.subr.bf16.mxu0 0
        %1324 = vmatpush2.bf16.xpose.msra.mxu0 0
        %1325 = vmatprep.subr.bf16.mxu0 0
        %1326 = vmatpush2.bf16.xpose.msra.mxu0 0
        %1327 = vmatprep.subr.bf16.mxu0 0
        %1328 = vmatpush2.bf16.xpose.msra.mxu0 0
        %1329 = vmatprep.mubr.bf16.mxu0 0
        %1330 = vmatmul.mubr.bf16.gmra.mxu0 %v1292
        %v1331 = vpop.f32.mrf.mxu0
        %v1332 = vadd.f32 0.0, %v1331
        %v1333 = vpop.f32.mrf.mxu0
        %v1334 = vpop.f32.mrf.mxu0
        %v1335 = vpop.f32.mrf.mxu0
        %1336 = vdwg.mxu0
        %v1337 = vmul.f32 %v1332, 0.17677669
        %v1338 = vadd.f32 %v1337, %v1222
        %v1339 = vsel %vm1225, %v1338, -inf
        %1340 = vmax.xlane.f32.xlu0 %v1339
        %v1341 = vpop.xlane.xlu0 %1340
        %v1342 = vsub.f32 %v1338, %v1341
        %v1343 = vmul.f32 %v1342, 1.442695
        %v1344 = vpow.pop %v1343
        %v1345 = vsel %vm1225, %v1344, 0.0
        %1346 = vadd.xlane.f32.xlu0 %v1345
        %v1347 = vpop.xlane.xlu0 %1346
        %v1348 = vrcp.pop %v1347
        %v1349 = vmul.f32 %v1344, %v1348
        %v1350 = vpack.c.bf16 %v1349, %v1349
        %1352 = vrot.lane.b32.xlu0 %v1169, 96
        %v1353 = vpop.permute.xlu0 %1352
        %v1355 = vsel %vm1225, %v1350, 0
        %v1358 = vsel %vm1241, %v1353, 0
        %1360 = vmatprep.subr.bf16.mxu0 0
        %1361 = vmatpush1.bf16.msra.mxu0 0
        %1362 = vmatprep.subr.bf16.mxu0 0
        %1363 = vmatpush1.bf16.msra.mxu0 0
        %1364 = vmatprep.subr.bf16.mxu0 0
        %1365 = vmatpush1.bf16.msra.mxu0 0
        %1366 = vmatprep.subr.bf16.mxu0 0
        %1367 = vmatpush1.bf16.msra.mxu0 0
        %1368 = vmatprep.subr.bf16.mxu0 0
        %1369 = vmatpush1.bf16.msra.mxu0 0
        %1370 = vmatprep.subr.bf16.mxu0 0
        %1371 = vmatpush1.bf16.msra.mxu0 0
        %1372 = vmatprep.subr.bf16.mxu0 0
        %1373 = vmatpush1.bf16.msra.mxu0 0
        %1374 = vmatprep.subr.bf16.mxu0 0
        %1375 = vmatpush1.bf16.msra.mxu0 %v1358
        %1376 = vmatprep.subr.bf16.mxu0 0
        %1377 = vmatpush2.bf16.msra.mxu0 0
        %1378 = vmatprep.subr.bf16.mxu0 0
        %1379 = vmatpush2.bf16.msra.mxu0 0
        %1380 = vmatprep.subr.bf16.mxu0 0
        %1381 = vmatpush2.bf16.msra.mxu0 0
        %1382 = vmatprep.subr.bf16.mxu0 0
        %1383 = vmatpush2.bf16.msra.mxu0 0
        %1384 = vmatprep.subr.bf16.mxu0 0
        %1385 = vmatpush2.bf16.msra.mxu0 0
        %1386 = vmatprep.subr.bf16.mxu0 0
        %1387 = vmatpush2.bf16.msra.mxu0 0
        %1388 = vmatprep.subr.bf16.mxu0 0
        %1389 = vmatpush2.bf16.msra.mxu0 0
        %1390 = vmatprep.subr.bf16.mxu0 0
        %1391 = vmatpush2.bf16.msra.mxu0 0
        %1392 = vmatprep.mubr.bf16.mxu0 0
        %1393 = vmatmul.mubr.bf16.gmra.mxu0 %v1355
        %v1394 = vpop.f32.mrf.mxu0
        %v1395 = vadd.f32 0.0, %v1394
        %v1396 = vpop.f32.mrf.mxu0
        %v1397 = vpop.f32.mrf.mxu0
        %v1398 = vpop.f32.mrf.mxu0
        %1399 = vdwg.mxu0
        %1400 = vrot.lane.b32.xlu0 %v1167, 64
        %v1401 = vpop.permute.xlu0 %1400
        %1402 = vrot.lane.b32.xlu0 %v1168, 64
        %v1403 = vpop.permute.xlu0 %1402
        %v1405 = vsel %vm1170, %v1401, 0
        %v1408 = vsel %vm1170, %v1403, 0
        %1410 = vmatprep.subr.bf16.mxu0 0
        %1411 = vmatpush1.bf16.xpose.msra.mxu0 0
        %1412 = vmatprep.subr.bf16.mxu0 0
        %1413 = vmatpush1.bf16.xpose.msra.mxu0 0
        %1414 = vmatprep.subr.bf16.mxu0 0
        %1415 = vmatpush1.bf16.xpose.msra.mxu0 0
        %1416 = vmatprep.subr.bf16.mxu0 0
        %1417 = vmatpush1.bf16.xpose.msra.mxu0 0
        %1418 = vmatprep.subr.bf16.mxu0 0
        %1419 = vmatpush1.bf16.xpose.msra.mxu0 0
        %1420 = vmatprep.subr.bf16.mxu0 0
        %1421 = vmatpush1.bf16.xpose.msra.mxu0 0
        %1422 = vmatprep.subr.bf16.mxu0 0
        %1423 = vmatpush1.bf16.xpose.msra.mxu0 0
        %1424 = vmatprep.subr.bf16.mxu0 0
        %1425 = vmatpush1.bf16.xpose.msra.mxu0 %v1408
        %1426 = vmatprep.subr.bf16.mxu0 0
        %1427 = vmatpush2.bf16.xpose.msra.mxu0 0
        %1428 = vmatprep.subr.bf16.mxu0 0
        %1429 = vmatpush2.bf16.xpose.msra.mxu0 0
        %1430 = vmatprep.subr.bf16.mxu0 0
        %1431 = vmatpush2.bf16.xpose.msra.mxu0 0
        %1432 = vmatprep.subr.bf16.mxu0 0
        %1433 = vmatpush2.bf16.xpose.msra.mxu0 0
        %1434 = vmatprep.subr.bf16.mxu0 0
        %1435 = vmatpush2.bf16.xpose.msra.mxu0 0
        %1436 = vmatprep.subr.bf16.mxu0 0
        %1437 = vmatpush2.bf16.xpose.msra.mxu0 0
        %1438 = vmatprep.subr.bf16.mxu0 0
        %1439 = vmatpush2.bf16.xpose.msra.mxu0 0
        %1440 = vmatprep.subr.bf16.mxu0 0
        %1441 = vmatpush2.bf16.xpose.msra.mxu0 0
        %1442 = vmatprep.mubr.bf16.mxu0 0
        %1443 = vmatmul.mubr.bf16.gmra.mxu0 %v1405
        %v1444 = vpop.f32.mrf.mxu0
        %v1445 = vadd.f32 0.0, %v1444
        %v1446 = vpop.f32.mrf.mxu0
        %v1447 = vpop.f32.mrf.mxu0
        %v1448 = vpop.f32.mrf.mxu0
        %1449 = vdwg.mxu0
        %v1450 = vmul.f32 %v1445, 0.17677669
        %v1451 = vadd.f32 %v1450, %v1222
        %v1452 = vsel %vm1225, %v1451, -inf
        %1453 = vmax.xlane.f32.xlu0 %v1452
        %v1454 = vpop.xlane.xlu0 %1453
        %v1455 = vsub.f32 %v1451, %v1454
        %v1456 = vmul.f32 %v1455, 1.442695
        %v1457 = vpow.pop %v1456
        %v1458 = vsel %vm1225, %v1457, 0.0
        %1459 = vadd.xlane.f32.xlu0 %v1458
        %v1460 = vpop.xlane.xlu0 %1459
        %v1461 = vrcp.pop %v1460
        %v1462 = vmul.f32 %v1457, %v1461
        %v1463 = vpack.c.bf16 %v1462, %v1462
        %1464 = vrot.lane.b32.xlu0 %v1169, 64
        %v1465 = vpop.permute.xlu0 %1464
        %v1467 = vsel %vm1225, %v1463, 0
        %v1470 = vsel %vm1241, %v1465, 0
        %1472 = vmatprep.subr.bf16.mxu0 0
        %1473 = vmatpush1.bf16.msra.mxu0 0
        %1474 = vmatprep.subr.bf16.mxu0 0
        %1475 = vmatpush1.bf16.msra.mxu0 0
        %1476 = vmatprep.subr.bf16.mxu0 0
        %1477 = vmatpush1.bf16.msra.mxu0 0
        %1478 = vmatprep.subr.bf16.mxu0 0
        %1479 = vmatpush1.bf16.msra.mxu0 0
        %1480 = vmatprep.subr.bf16.mxu0 0
        %1481 = vmatpush1.bf16.msra.mxu0 0
        %1482 = vmatprep.subr.bf16.mxu0 0
        %1483 = vmatpush1.bf16.msra.mxu0 0
        %1484 = vmatprep.subr.bf16.mxu0 0
        %1485 = vmatpush1.bf16.msra.mxu0 0
        %1486 = vmatprep.subr.bf16.mxu0 0
        %1487 = vmatpush1.bf16.msra.mxu0 %v1470
        %1488 = vmatprep.subr.bf16.mxu0 0
        %1489 = vmatpush2.bf16.msra.mxu0 0
        %1490 = vmatprep.subr.bf16.mxu0 0
        %1491 = vmatpush2.bf16.msra.mxu0 0
        %1492 = vmatprep.subr.bf16.mxu0 0
        %1493 = vmatpush2.bf16.msra.mxu0 0
        %1494 = vmatprep.subr.bf16.mxu0 0
        %1495 = vmatpush2.bf16.msra.mxu0 0
        %1496 = vmatprep.subr.bf16.mxu0 0
        %1497 = vmatpush2.bf16.msra.mxu0 0
        %1498 = vmatprep.subr.bf16.mxu0 0
        %1499 = vmatpush2.bf16.msra.mxu0 0
        %1500 = vmatprep.subr.bf16.mxu0 0
        %1501 = vmatpush2.bf16.msra.mxu0 0
        %1502 = vmatprep.subr.bf16.mxu0 0
        %1503 = vmatpush2.bf16.msra.mxu0 0
        %1504 = vmatprep.mubr.bf16.mxu0 0
        %1505 = vmatmul.mubr.bf16.gmra.mxu0 %v1467
        %v1506 = vpop.f32.mrf.mxu0
        %v1507 = vadd.f32 0.0, %v1506
        %v1508 = vpop.f32.mrf.mxu0
        %v1509 = vpop.f32.mrf.mxu0
        %v1510 = vpop.f32.mrf.mxu0
        %1511 = vdwg.mxu0
        %1512 = vrot.lane.b32.xlu0 %v1167, 32
        %v1513 = vpop.permute.xlu0 %1512
        %1514 = vrot.lane.b32.xlu0 %v1168, 32
        %v1515 = vpop.permute.xlu0 %1514
        %v1517 = vsel %vm1170, %v1513, 0
        %v1520 = vsel %vm1170, %v1515, 0
        %1522 = vmatprep.subr.bf16.mxu0 0
        %1523 = vmatpush1.bf16.xpose.msra.mxu0 0
        %1524 = vmatprep.subr.bf16.mxu0 0
        %1525 = vmatpush1.bf16.xpose.msra.mxu0 0
        %1526 = vmatprep.subr.bf16.mxu0 0
        %1527 = vmatpush1.bf16.xpose.msra.mxu0 0
        %1528 = vmatprep.subr.bf16.mxu0 0
        %1529 = vmatpush1.bf16.xpose.msra.mxu0 0
        %1530 = vmatprep.subr.bf16.mxu0 0
        %1531 = vmatpush1.bf16.xpose.msra.mxu0 0
        %1532 = vmatprep.subr.bf16.mxu0 0
        %1533 = vmatpush1.bf16.xpose.msra.mxu0 0
        %1534 = vmatprep.subr.bf16.mxu0 0
        %1535 = vmatpush1.bf16.xpose.msra.mxu0 0
        %1536 = vmatprep.subr.bf16.mxu0 0
        %1537 = vmatpush1.bf16.xpose.msra.mxu0 %v1520
        %1538 = vmatprep.subr.bf16.mxu0 0
        %1539 = vmatpush2.bf16.xpose.msra.mxu0 0
        %1540 = vmatprep.subr.bf16.mxu0 0
        %1541 = vmatpush2.bf16.xpose.msra.mxu0 0
        %1542 = vmatprep.subr.bf16.mxu0 0
        %1543 = vmatpush2.bf16.xpose.msra.mxu0 0
        %1544 = vmatprep.subr.bf16.mxu0 0
        %1545 = vmatpush2.bf16.xpose.msra.mxu0 0
        %1546 = vmatprep.subr.bf16.mxu0 0
        %1547 = vmatpush2.bf16.xpose.msra.mxu0 0
        %1548 = vmatprep.subr.bf16.mxu0 0
        %1549 = vmatpush2.bf16.xpose.msra.mxu0 0
        %1550 = vmatprep.subr.bf16.mxu0 0
        %1551 = vmatpush2.bf16.xpose.msra.mxu0 0
        %1552 = vmatprep.subr.bf16.mxu0 0
        %1553 = vmatpush2.bf16.xpose.msra.mxu0 0
        %1554 = vmatprep.mubr.bf16.mxu0 0
        %1555 = vmatmul.mubr.bf16.gmra.mxu0 %v1517
        %v1556 = vpop.f32.mrf.mxu0
        %v1557 = vadd.f32 0.0, %v1556
        %v1558 = vpop.f32.mrf.mxu0
        %v1559 = vpop.f32.mrf.mxu0
        %v1560 = vpop.f32.mrf.mxu0
        %1561 = vdwg.mxu0
        %v1562 = vmul.f32 %v1557, 0.17677669
        %v1563 = vadd.f32 %v1562, %v1222
        %v1564 = vsel %vm1225, %v1563, -inf
        %1565 = vmax.xlane.f32.xlu0 %v1564
        %v1566 = vpop.xlane.xlu0 %1565
        %v1567 = vsub.f32 %v1563, %v1566
        %v1568 = vmul.f32 %v1567, 1.442695
        %v1569 = vpow.pop %v1568
        %v1570 = vsel %vm1225, %v1569, 0.0
        %1571 = vadd.xlane.f32.xlu0 %v1570
        %v1572 = vpop.xlane.xlu0 %1571
        %v1573 = vrcp.pop %v1572
        %v1574 = vmul.f32 %v1569, %v1573
        %v1575 = vpack.c.bf16 %v1574, %v1574
        %1576 = vrot.lane.b32.xlu0 %v1169, 32
        %v1577 = vpop.permute.xlu0 %1576
        %v1579 = vsel %vm1225, %v1575, 0
        %v1582 = vsel %vm1241, %v1577, 0
        %1584 = vmatprep.subr.bf16.mxu0 0
        %1585 = vmatpush1.bf16.msra.mxu0 0
        %1586 = vmatprep.subr.bf16.mxu0 0
        %1587 = vmatpush1.bf16.msra.mxu0 0
        %1588 = vmatprep.subr.bf16.mxu0 0
        %1589 = vmatpush1.bf16.msra.mxu0 0
        %1590 = vmatprep.subr.bf16.mxu0 0
        %1591 = vmatpush1.bf16.msra.mxu0 0
        %1592 = vmatprep.subr.bf16.mxu0 0
        %1593 = vmatpush1.bf16.msra.mxu0 0
        %1594 = vmatprep.subr.bf16.mxu0 0
        %1595 = vmatpush1.bf16.msra.mxu0 0
        %1596 = vmatprep.subr.bf16.mxu0 0
        %1597 = vmatpush1.bf16.msra.mxu0 0
        %1598 = vmatprep.subr.bf16.mxu0 0
        %1599 = vmatpush1.bf16.msra.mxu0 %v1582
        %1600 = vmatprep.subr.bf16.mxu0 0
        %1601 = vmatpush2.bf16.msra.mxu0 0
        %1602 = vmatprep.subr.bf16.mxu0 0
        %1603 = vmatpush2.bf16.msra.mxu0 0
        %1604 = vmatprep.subr.bf16.mxu0 0
        %1605 = vmatpush2.bf16.msra.mxu0 0
        %1606 = vmatprep.subr.bf16.mxu0 0
        %1607 = vmatpush2.bf16.msra.mxu0 0
        %1608 = vmatprep.subr.bf16.mxu0 0
        %1609 = vmatpush2.bf16.msra.mxu0 0
        %1610 = vmatprep.subr.bf16.mxu0 0
        %1611 = vmatpush2.bf16.msra.mxu0 0
        %1612 = vmatprep.subr.bf16.mxu0 0
        %1613 = vmatpush2.bf16.msra.mxu0 0
        %1614 = vmatprep.subr.bf16.mxu0 0
        %1615 = vmatpush2.bf16.msra.mxu0 0
        %1616 = vmatprep.mubr.bf16.mxu0 0
        %1617 = vmatmul.mubr.bf16.gmra.mxu0 %v1579
        %v1618 = vpop.f32.mrf.mxu0
        %v1619 = vadd.f32 0.0, %v1618
        %v1620 = vpop.f32.mrf.mxu0
        %v1621 = vpop.f32.mrf.mxu0
        %v1622 = vpop.f32.mrf.mxu0
        %1623 = vdwg.mxu0
        %1625 = vrot.lane.b32.xlu0 %v1395, 32
        %v1626 = vpop.permute.xlu0 %1625
        %1629 = vrot.lane.b32.xlu0 %v1507, 64
        %v1630 = vpop.permute.xlu0 %1629
        %1633 = vrot.lane.b32.xlu0 %v1619, 96
        %v1634 = vpop.permute.xlu0 %1633
        %v1636 = vsel %vm1170, %v1280, %v1626
        %vm1637 = vcmask 523264
        %v1638 = vsel %vm1637, %v1636, %v1630
        %vm1639 = vcmask 785408
        %v1640 = vsel %vm1639, %v1638, %v1634
        %v1641 = vpack.c.bf16 %v1640, %v1640
        %v1642 = vld [vmem:[%s849] sm:$0xf]
        %v1643 = vld [vmem:[%s849 + $0x4] sm:$0xf]
        %v1644 = vld [vmem:[%s849 + $0x8] sm:$0xf]
        %v1645 = vld [vmem:[%s849 + $0xc] sm:$0xf]
        %v1646 = vld [vmem:[%s849 + $0x10] sm:$0xf]
        %v1647 = vld [vmem:[%s849 + $0x14] sm:$0xf]
        %v1648 = vld [vmem:[%s849 + $0x18] sm:$0xf]
        %v1649 = vld [vmem:[%s849 + $0x1c] sm:$0xf]
        %v1650 = vld [vmem:[%s849 + $0x20] sm:$0xf]
        %v1651 = vld [vmem:[%s849 + $0x24] sm:$0xf]
        %v1652 = vld [vmem:[%s849 + $0x28] sm:$0xf]
        %v1653 = vld [vmem:[%s849 + $0x2c] sm:$0xf]
        %v1654 = vld [vmem:[%s849 + $0x30] sm:$0xf]
        %v1655 = vld [vmem:[%s849 + $0x34] sm:$0xf]
        %v1656 = vld [vmem:[%s849 + $0x38] sm:$0xf]
        %v1657 = vld [vmem:[%s849 + $0x3c] sm:$0xf]
        %v1658 = vld [vmem:[%s712] sm:$0x1]
        %v1660 = vlaneseq
        %v1661 = vshrl.u32 %v1660, 7
        %v1662 = vsub.s32 0, %v1661
        %v1663 = vrot.slane %v1658, %v1662
        %v1681 = vunpack.c.l.b16 %v1642
        %v1682 = vunpack.c.l.b16 %v1643
        %v1683 = vunpack.c.l.b16 %v1644
        %v1684 = vunpack.c.l.b16 %v1645
        %v1685 = vunpack.c.l.b16 %v1646
        %v1686 = vunpack.c.l.b16 %v1647
        %v1687 = vunpack.c.l.b16 %v1648
        %v1688 = vunpack.c.l.b16 %v1649
        %v1689 = vunpack.c.l.b16 %v1650
        %v1690 = vunpack.c.l.b16 %v1651
        %v1691 = vunpack.c.l.b16 %v1652
        %v1692 = vunpack.c.l.b16 %v1653
        %v1693 = vunpack.c.l.b16 %v1654
        %v1694 = vunpack.c.l.b16 %v1655
        %v1695 = vunpack.c.l.b16 %v1656
        %v1696 = vunpack.c.l.b16 %v1657
        %v1697 = vpack.c.b16 %v1682, %v1681
        %v1698 = vpack.c.b16 %v1684, %v1683
        %v1699 = vpack.c.b16 %v1686, %v1685
        %v1700 = vpack.c.b16 %v1688, %v1687
        %v1701 = vpack.c.b16 %v1690, %v1689
        %v1702 = vpack.c.b16 %v1692, %v1691
        %v1703 = vpack.c.b16 %v1694, %v1693
        %v1704 = vpack.c.b16 %v1696, %v1695
        %1713 = vmatprep.subr.bf16.mxu0 0
        %1714 = vmatpush1.bf16.msra.mxu0 %v1704
        %1715 = vmatprep.subr.bf16.mxu0 0
        %1716 = vmatpush1.bf16.msra.mxu0 %v1703
        %1717 = vmatprep.subr.bf16.mxu0 0
        %1718 = vmatpush1.bf16.msra.mxu0 %v1702
        %1719 = vmatprep.subr.bf16.mxu0 0
        %1720 = vmatpush1.bf16.msra.mxu0 %v1701
        %1721 = vmatprep.subr.bf16.mxu0 0
        %1722 = vmatpush1.bf16.msra.mxu0 %v1700
        %1723 = vmatprep.subr.bf16.mxu0 0
        %1724 = vmatpush1.bf16.msra.mxu0 %v1699
        %1725 = vmatprep.subr.bf16.mxu0 0
        %1726 = vmatpush1.bf16.msra.mxu0 %v1698
        %1727 = vmatprep.subr.bf16.mxu0 0
        %1728 = vmatpush1.bf16.msra.mxu0 %v1697
        %1729 = vmatprep.subr.bf16.mxu0 0
        %1730 = vmatpush2.bf16.msra.mxu0 0
        %1731 = vmatprep.subr.bf16.mxu0 0
        %1732 = vmatpush2.bf16.msra.mxu0 0
        %1733 = vmatprep.subr.bf16.mxu0 0
        %1734 = vmatpush2.bf16.msra.mxu0 0
        %1735 = vmatprep.subr.bf16.mxu0 0
        %1736 = vmatpush2.bf16.msra.mxu0 0
        %1737 = vmatprep.subr.bf16.mxu0 0
        %1738 = vmatpush2.bf16.msra.mxu0 0
        %1739 = vmatprep.subr.bf16.mxu0 0
        %1740 = vmatpush2.bf16.msra.mxu0 0
        %1741 = vmatprep.subr.bf16.mxu0 0
        %1742 = vmatpush2.bf16.msra.mxu0 0
        %1743 = vmatprep.subr.bf16.mxu0 0
        %1744 = vmatpush2.bf16.msra.mxu0 0
        %1745 = vmatprep.mubr.bf16.mxu0 0
        %1746 = vmatmul.mubr.bf16.gmra.mxu0 %v1641
        %v1747 = vpop.f32.mrf.mxu0
        %v1748 = vadd.f32 %v1663, %v1747
        %v1749 = vpop.f32.mrf.mxu0
        %v1750 = vpop.f32.mrf.mxu0
        %v1751 = vpop.f32.mrf.mxu0
        %1752 = vdwg.mxu0
        %v1753 = vadd.f32 %v1748, %v906
        %v1754 = vld [vmem:[%s852] sm:$0x1]
        %v1755 = vld [vmem:[%s855] sm:$0x1]
        %1756 = vadd.xlane.f32.xlu0 %v1753
        %v1757 = vpop.xlane.xlu0 %1756
        %v1758 = vrcp.pop 128.0
        %v1759 = vmul.f32 %v1757, %v1758
        %v1760 = vsub.f32 %v1753, %v1759
        %v1761 = vmul.f32 %v1760, %v1760
        %1762 = vadd.xlane.f32.xlu0 %v1761
        %v1763 = vpop.xlane.xlu0 %1762
        %v1764 = vmul.f32 %v1763, %v1758
        %v1765 = vadd.f32 %v1764, 1e-05
        %v1766 = vrsqrt.pop %v1765
        %v1767 = vmul.f32 %v1760, %v1766
        %v1769 = vlaneseq
        %v1770 = vshrl.u32 %v1769, 7
        %v1771 = vsub.s32 0, %v1770
        %v1772 = vrot.slane %v1754, %v1771
        %v1774 = vmul.f32 %v1767, %v1772
        %v1776 = vlaneseq
        %v1777 = vshrl.u32 %v1776, 7
        %v1778 = vsub.s32 0, %v1777
        %v1779 = vrot.slane %v1755, %v1778
        %v1781 = vadd.f32 %v1774, %v1779
        %v1782 = vpack.c.bf16 %v1781, %v1781
        %v1783 = vld [vmem:[%s860] sm:$0xff]
        %v1784 = vld [vmem:[%s860 + $0x8] sm:$0xff]
        %v1785 = vld [vmem:[%s860 + $0x10] sm:$0xff]
        %v1786 = vld [vmem:[%s860 + $0x18] sm:$0xff]
        %v1787 = vld [vmem:[%s860 + $0x20] sm:$0xff]
        %v1788 = vld [vmem:[%s860 + $0x28] sm:$0xff]
        %v1789 = vld [vmem:[%s860 + $0x30] sm:$0xff]
        %v1790 = vld [vmem:[%s860 + $0x38] sm:$0xff]
        %v1791 = vld [vmem:[%s860 + $0x40] sm:$0xff]
        %v1792 = vld [vmem:[%s860 + $0x48] sm:$0xff]
        %v1793 = vld [vmem:[%s860 + $0x50] sm:$0xff]
        %v1794 = vld [vmem:[%s860 + $0x58] sm:$0xff]
        %v1795 = vld [vmem:[%s860 + $0x60] sm:$0xff]
        %v1796 = vld [vmem:[%s860 + $0x68] sm:$0xff]
        %v1797 = vld [vmem:[%s860 + $0x70] sm:$0xff]
        %v1798 = vld [vmem:[%s860 + $0x78] sm:$0xff]
        %v1799 = vld [vmem:[%s721] sm:$0x3]
        %v1801 = vlaneseq
        %v1802 = vshrl.u32 %v1801, 7
        %v1803 = vsub.s32 0, %v1802
        %v1804 = vrot.slane %v1799, %v1803
        %v1805 = vlaneseq
        %v1806 = vshrl.u32 %v1805, 7
        %v1807 = vsub.s32 1, %v1806
        %v1808 = vrot.slane %v1799, %v1807
        %v1827 = vunpack.c.l.b16 %v1783
        %v1828 = vunpack.c.h.b16 %v1783
        %v1829 = vunpack.c.l.b16 %v1784
        %v1830 = vunpack.c.h.b16 %v1784
        %v1831 = vunpack.c.l.b16 %v1785
        %v1832 = vunpack.c.h.b16 %v1785
        %v1833 = vunpack.c.l.b16 %v1786
        %v1834 = vunpack.c.h.b16 %v1786
        %v1835 = vunpack.c.l.b16 %v1787
        %v1836 = vunpack.c.h.b16 %v1787
        %v1837 = vunpack.c.l.b16 %v1788
        %v1838 = vunpack.c.h.b16 %v1788
        %v1839 = vunpack.c.l.b16 %v1789
        %v1840 = vunpack.c.h.b16 %v1789
        %v1841 = vunpack.c.l.b16 %v1790
        %v1842 = vunpack.c.h.b16 %v1790
        %v1843 = vunpack.c.l.b16 %v1791
        %v1844 = vunpack.c.h.b16 %v1791
        %v1845 = vunpack.c.l.b16 %v1792
        %v1846 = vunpack.c.h.b16 %v1792
        %v1847 = vunpack.c.l.b16 %v1793
        %v1848 = vunpack.c.h.b16 %v1793
        %v1849 = vunpack.c.l.b16 %v1794
        %v1850 = vunpack.c.h.b16 %v1794
        %v1851 = vunpack.c.l.b16 %v1795
        %v1852 = vunpack.c.h.b16 %v1795
        %v1853 = vunpack.c.l.b16 %v1796
        %v1854 = vunpack.c.h.b16 %v1796
        %v1855 = vunpack.c.l.b16 %v1797
        %v1856 = vunpack.c.h.b16 %v1797
        %v1857 = vunpack.c.l.b16 %v1798
        %v1858 = vunpack.c.h.b16 %v1798
        %v1859 = vpack.c.b16 %v1829, %v1827
        %v1860 = vpack.c.b16 %v1830, %v1828
        %v1861 = vpack.c.b16 %v1833, %v1831
        %v1862 = vpack.c.b16 %v1834, %v1832
        %v1863 = vpack.c.b16 %v1837, %v1835
        %v1864 = vpack.c.b16 %v1838, %v1836
        %v1865 = vpack.c.b16 %v1841, %v1839
        %v1866 = vpack.c.b16 %v1842, %v1840
        %v1867 = vpack.c.b16 %v1845, %v1843
        %v1868 = vpack.c.b16 %v1846, %v1844
        %v1869 = vpack.c.b16 %v1849, %v1847
        %v1870 = vpack.c.b16 %v1850, %v1848
        %v1871 = vpack.c.b16 %v1853, %v1851
        %v1872 = vpack.c.b16 %v1854, %v1852
        %v1873 = vpack.c.b16 %v1857, %v1855
        %v1874 = vpack.c.b16 %v1858, %v1856
        %1891 = vmatprep.subr.bf16.mxu0 %v1874
        %1892 = vmatpush1.bf16.msra.mxu0 %v1873
        %1893 = vmatprep.subr.bf16.mxu0 %v1872
        %1894 = vmatpush1.bf16.msra.mxu0 %v1871
        %1895 = vmatprep.subr.bf16.mxu0 %v1870
        %1896 = vmatpush1.bf16.msra.mxu0 %v1869
        %1897 = vmatprep.subr.bf16.mxu0 %v1868
        %1898 = vmatpush1.bf16.msra.mxu0 %v1867
        %1899 = vmatprep.subr.bf16.mxu0 %v1866
        %1900 = vmatpush1.bf16.msra.mxu0 %v1865
        %1901 = vmatprep.subr.bf16.mxu0 %v1864
        %1902 = vmatpush1.bf16.msra.mxu0 %v1863
        %1903 = vmatprep.subr.bf16.mxu0 %v1862
        %1904 = vmatpush1.bf16.msra.mxu0 %v1861
        %1905 = vmatprep.subr.bf16.mxu0 %v1860
        %1906 = vmatpush1.bf16.msra.mxu0 %v1859
        %1907 = vmatprep.subr.bf16.mxu0 0
        %1908 = vmatpush2.bf16.msra.mxu0 0
        %1909 = vmatprep.subr.bf16.mxu0 0
        %1910 = vmatpush2.bf16.msra.mxu0 0
        %1911 = vmatprep.subr.bf16.mxu0 0
        %1912 = vmatpush2.bf16.msra.mxu0 0
        %1913 = vmatprep.subr.bf16.mxu0 0
        %1914 = vmatpush2.bf16.msra.mxu0 0
        %1915 = vmatprep.subr.bf16.mxu0 0
        %1916 = vmatpush2.bf16.msra.mxu0 0
        %1917 = vmatprep.subr.bf16.mxu0 0
        %1918 = vmatpush2.bf16.msra.mxu0 0
        %1919 = vmatprep.subr.bf16.mxu0 0
        %1920 = vmatpush2.bf16.msra.mxu0 0
        %1921 = vmatprep.subr.bf16.mxu0 0
        %1922 = vmatpush2.bf16.msra.mxu0 0
        %1923 = vmatprep.mubr.bf16.mxu0 0
        %1924 = vmatmul.mubr.bf16.gmra.mxu0 %v1782
        %v1925 = vpop.f32.mrf.mxu0
        %v1926 = vadd.f32 %v1804, %v1925
        %v1927 = vpop.f32.mrf.mxu0
        %v1928 = vadd.f32 %v1808, %v1927
        %v1929 = vpop.f32.mrf.mxu0
        %v1930 = vpop.f32.mrf.mxu0
        %1931 = vdwg.mxu0
        %v1932 = vmul.f32 %v1926, 0.5
        %v1933 = vmul.f32 %v1928, 0.5
        %v1934 = vmul.f32 %v1926, 0.044715
        %v1935 = vmul.f32 %v1928, 0.044715
        %v1936 = vmul.f32 %v1934, %v1926
        %v1937 = vmul.f32 %v1935, %v1928
        %v1938 = vmul.f32 %v1936, %v1926
        %v1939 = vmul.f32 %v1937, %v1928
        %v1940 = vadd.f32 %v1926, %v1938
        %v1941 = vadd.f32 %v1928, %v1939
        %v1942 = vmul.f32 %v1940, 0.7978846
        %v1943 = vmul.f32 %v1941, 0.7978846
        %v1944 = vtanh.pop %v1942
        %v1945 = vtanh.pop %v1943
        %v1946 = vadd.f32 %v1944, 1.0
        %v1947 = vadd.f32 %v1945, 1.0
        %v1948 = vmul.f32 %v1932, %v1946
        %v1949 = vmul.f32 %v1933, %v1947
        %v1950 = vpack.c.bf16 %v1948, %v1948
        %v1951 = vpack.c.bf16 %v1949, %v1949
        %v1952 = vld [vmem:[%s730] sm:$0xf]
        %v1953 = vld [vmem:[%s730 + $0x4] sm:$0xf]
        %v1954 = vld [vmem:[%s730 + $0x8] sm:$0xf]
        %v1955 = vld [vmem:[%s730 + $0xc] sm:$0xf]
        %v1956 = vld [vmem:[%s730 + $0x10] sm:$0xf]
        %v1957 = vld [vmem:[%s730 + $0x14] sm:$0xf]
        %v1958 = vld [vmem:[%s730 + $0x18] sm:$0xf]
        %v1959 = vld [vmem:[%s730 + $0x1c] sm:$0xf]
        %v1960 = vld [vmem:[%s730 + $0x20] sm:$0xf]
        %v1961 = vld [vmem:[%s730 + $0x24] sm:$0xf]
        %v1962 = vld [vmem:[%s730 + $0x28] sm:$0xf]
        %v1963 = vld [vmem:[%s730 + $0x2c] sm:$0xf]
        %v1964 = vld [vmem:[%s730 + $0x30] sm:$0xf]
        %v1965 = vld [vmem:[%s730 + $0x34] sm:$0xf]
        %v1966 = vld [vmem:[%s730 + $0x38] sm:$0xf]
        %v1967 = vld [vmem:[%s730 + $0x3c] sm:$0xf]
        %v1968 = vld [vmem:[%s730 + $0x40] sm:$0xf]
        %v1969 = vld [vmem:[%s730 + $0x44] sm:$0xf]
        %v1970 = vld [vmem:[%s730 + $0x48] sm:$0xf]
        %v1971 = vld [vmem:[%s730 + $0x4c] sm:$0xf]
        %v1972 = vld [vmem:[%s730 + $0x50] sm:$0xf]
        %v1973 = vld [vmem:[%s730 + $0x54] sm:$0xf]
        %v1974 = vld [vmem:[%s730 + $0x58] sm:$0xf]
        %v1975 = vld [vmem:[%s730 + $0x5c] sm:$0xf]
        %v1976 = vld [vmem:[%s730 + $0x60] sm:$0xf]
        %v1977 = vld [vmem:[%s730 + $0x64] sm:$0xf]
        %v1978 = vld [vmem:[%s730 + $0x68] sm:$0xf]
        %v1979 = vld [vmem:[%s730 + $0x6c] sm:$0xf]
        %v1980 = vld [vmem:[%s730 + $0x70] sm:$0xf]
        %v1981 = vld [vmem:[%s730 + $0x74] sm:$0xf]
        %v1982 = vld [vmem:[%s730 + $0x78] sm:$0xf]
        %v1983 = vld [vmem:[%s730 + $0x7c] sm:$0xf]
        %v1984 = vld [vmem:[%s738] sm:$0x1]
        %v1986 = vlaneseq
        %v1987 = vshrl.u32 %v1986, 7
        %v1988 = vsub.s32 0, %v1987
        %v1989 = vrot.slane %v1984, %v1988
        %v2023 = vunpack.c.l.b16 %v1952
        %v2024 = vunpack.c.l.b16 %v1953
        %v2025 = vunpack.c.l.b16 %v1954
        %v2026 = vunpack.c.l.b16 %v1955
        %v2027 = vunpack.c.l.b16 %v1956
        %v2028 = vunpack.c.l.b16 %v1957
        %v2029 = vunpack.c.l.b16 %v1958
        %v2030 = vunpack.c.l.b16 %v1959
        %v2031 = vunpack.c.l.b16 %v1960
        %v2032 = vunpack.c.l.b16 %v1961
        %v2033 = vunpack.c.l.b16 %v1962
        %v2034 = vunpack.c.l.b16 %v1963
        %v2035 = vunpack.c.l.b16 %v1964
        %v2036 = vunpack.c.l.b16 %v1965
        %v2037 = vunpack.c.l.b16 %v1966
        %v2038 = vunpack.c.l.b16 %v1967
        %v2039 = vunpack.c.l.b16 %v1968
        %v2040 = vunpack.c.l.b16 %v1969
        %v2041 = vunpack.c.l.b16 %v1970
        %v2042 = vunpack.c.l.b16 %v1971
        %v2043 = vunpack.c.l.b16 %v1972
        %v2044 = vunpack.c.l.b16 %v1973
        %v2045 = vunpack.c.l.b16 %v1974
        %v2046 = vunpack.c.l.b16 %v1975
        %v2047 = vunpack.c.l.b16 %v1976
        %v2048 = vunpack.c.l.b16 %v1977
        %v2049 = vunpack.c.l.b16 %v1978
        %v2050 = vunpack.c.l.b16 %v1979
        %v2051 = vunpack.c.l.b16 %v1980
        %v2052 = vunpack.c.l.b16 %v1981
        %v2053 = vunpack.c.l.b16 %v1982
        %v2054 = vunpack.c.l.b16 %v1983
        %v2055 = vpack.c.b16 %v2024, %v2023
        %v2056 = vpack.c.b16 %v2026, %v2025
        %v2057 = vpack.c.b16 %v2028, %v2027
        %v2058 = vpack.c.b16 %v2030, %v2029
        %v2059 = vpack.c.b16 %v2032, %v2031
        %v2060 = vpack.c.b16 %v2034, %v2033
        %v2061 = vpack.c.b16 %v2036, %v2035
        %v2062 = vpack.c.b16 %v2038, %v2037
        %v2063 = vpack.c.b16 %v2040, %v2039
        %v2064 = vpack.c.b16 %v2042, %v2041
        %v2065 = vpack.c.b16 %v2044, %v2043
        %v2066 = vpack.c.b16 %v2046, %v2045
        %v2067 = vpack.c.b16 %v2048, %v2047
        %v2068 = vpack.c.b16 %v2050, %v2049
        %v2069 = vpack.c.b16 %v2052, %v2051
        %v2070 = vpack.c.b16 %v2054, %v2053
        %2087 = vmatprep.subr.bf16.mxu0 0
        %2088 = vmatpush1.bf16.msra.mxu0 %v2062
        %2089 = vmatprep.subr.bf16.mxu0 0
        %2090 = vmatpush1.bf16.msra.mxu0 %v2061
        %2091 = vmatprep.subr.bf16.mxu0 0
        %2092 = vmatpush1.bf16.msra.mxu0 %v2060
        %2093 = vmatprep.subr.bf16.mxu0 0
        %2094 = vmatpush1.bf16.msra.mxu0 %v2059
        %2095 = vmatprep.subr.bf16.mxu0 0
        %2096 = vmatpush1.bf16.msra.mxu0 %v2058
        %2097 = vmatprep.subr.bf16.mxu0 0
        %2098 = vmatpush1.bf16.msra.mxu0 %v2057
        %2099 = vmatprep.subr.bf16.mxu0 0
        %2100 = vmatpush1.bf16.msra.mxu0 %v2056
        %2101 = vmatprep.subr.bf16.mxu0 0
        %2102 = vmatpush1.bf16.msra.mxu0 %v2055
        %2103 = vmatprep.subr.bf16.mxu0 0
        %2104 = vmatpush2.bf16.msra.mxu0 %v2070
        %2105 = vmatprep.subr.bf16.mxu0 0
        %2106 = vmatpush2.bf16.msra.mxu0 %v2069
        %2107 = vmatprep.subr.bf16.mxu0 0
        %2108 = vmatpush2.bf16.msra.mxu0 %v2068
        %2109 = vmatprep.subr.bf16.mxu0 0
        %2110 = vmatpush2.bf16.msra.mxu0 %v2067
        %2111 = vmatprep.subr.bf16.mxu0 0
        %2112 = vmatpush2.bf16.msra.mxu0 %v2066
        %2113 = vmatprep.subr.bf16.mxu0 0
        %2114 = vmatpush2.bf16.msra.mxu0 %v2065
        %2115 = vmatprep.subr.bf16.mxu0 0
        %2116 = vmatpush2.bf16.msra.mxu0 %v2064
        %2117 = vmatprep.subr.bf16.mxu0 0
        %2118 = vmatpush2.bf16.msra.mxu0 %v2063
        %2119 = vmatprep.mubr.bf16.mxu0 %v1951
        %2120 = vmatmul.mubr.bf16.gmra.mxu0 %v1950
        %v2121 = vpop.f32.mrf.mxu0
        %v2122 = vadd.f32 %v1989, %v2121
        %v2123 = vpop.f32.mrf.mxu0
        %v2124 = vpop.f32.mrf.mxu0
        %v2125 = vpop.f32.mrf.mxu0
        %2126 = vdwg.mxu0
        %v2127 = vadd.f32 %v2122, %v1781
        %v2128 = vld [vmem:[%s863] sm:$0x1]
        %v2129 = vld [vmem:[%s866] sm:$0x1]
        %2130 = vadd.xlane.f32.xlu0 %v2127
        %v2131 = vpop.xlane.xlu0 %2130
        %v2132 = vmul.f32 %v2131, %v1758
        %v2133 = vsub.f32 %v2127, %v2132
        %v2134 = vmul.f32 %v2133, %v2133
        %2135 = vadd.xlane.f32.xlu0 %v2134
        %v2136 = vpop.xlane.xlu0 %2135
        %v2137 = vmul.f32 %v2136, %v1758
        %v2138 = vadd.f32 %v2137, 1e-05
        %v2139 = vrsqrt.pop %v2138
        %v2140 = vmul.f32 %v2133, %v2139
        %v2142 = vlaneseq
        %v2143 = vshrl.u32 %v2142, 7
        %v2144 = vsub.s32 0, %v2143
        %v2145 = vrot.slane %v2128, %v2144
        %v2147 = vmul.f32 %v2140, %v2145
        %v2149 = vlaneseq
        %v2150 = vshrl.u32 %v2149, 7
        %v2151 = vsub.s32 0, %v2150
        %v2152 = vrot.slane %v2129, %v2151
        %v2154 = vadd.f32 %v2147, %v2152
        %2155 = vst [vmem:[%s870] sm:$0xff] %v2154
        %p2156 = scmp.lt.s32.totalorder %s33, 1
        %s2157 = scalar_select %p2156, %s33, 1
        %s2158 = smul.addr %s2157, 8
        %s2159 = scalar_lea.vmem %s16, %s2158
        // Predicated region
        $region121: #{roberta_class_forward.2} parent=83 // pred_check
          %p2160 = pneg %p465
        $region122: #{roberta_class_forward.2} parent=83 // pred_check_branch
          %2162 = sbr.rel (%p2160) target = $region124
        $region123: #{roberta_class_forward.2} parent=83 // pred_region
          _
        $region124: #{roberta_class_forward.2} parent=83 // pred_fallthru
          _
      $region84: #{roberta_class_forward.2} parent=5 // pred_fallthru
        _
      %p2163 = scmp.le.s32.totalorder 2, %s24
      // Predicated region
      $region125: #{roberta_class_forward.2} parent=5 // pred_check
        %p2164 = pneg %p2163
      $region126: #{roberta_class_forward.2} parent=5 // pred_check_branch
        %2166 = sbr.rel (%p2164) target = $region128
      $region127: #{roberta_class_forward.2} parent=5 // pred_region
        %s2167 = ssub.s32 %s24, 2
        // Predicated region
        $region129: #{roberta_class_forward.2} parent=127 // pred_check
          %p2168 = pneg %p471
        $region130: #{roberta_class_forward.2} parent=127 // pred_check_branch
          %2170 = sbr.rel (%p2168) target = $region132
        $region131: #{roberta_class_forward.2} parent=127 // pred_region
          %p2171 = scmp.lt.s32.totalorder %s35, 1
          %s2172 = scalar_select %p2171, %s35, 1
          %s2173 = smul.addr %s2172, 8
          %s2174 = scalar_lea.vmem %s16, %s2173
        $region132: #{roberta_class_forward.2} parent=127 // pred_fallthru
          _
      $region128: #{roberta_class_forward.2} parent=5 // pred_fallthru
        _
    $region6: #{roberta_class_forward.2} parent=1 // loop_footer
      %s28 = sadd.s32 1, %s24
    $region7: #{roberta_class_forward.2} parent=1 // loop_footer_branch
      %23 = sbr.rel target = $region3
    $region8: #{roberta_class_forward.2} parent=1 // loop_exit
      _
    %2175 = vsyncpa [#allocation3], 1
    %s2176 = scalar_lea.sflag [#allocation3], 1
    %2177 = vsyncpa %s2176, 1
    %2178 = vsyncpa [#allocation5], 1

</llo_original>
